<compile_context>
chip_gen: v5e
topology: v5e:2x2
jax: 0.10.0
libtpu: 0.0.40
codegen_flags: <defaults>
</compile_context>

<pallas_src>
import functools

import jax
import jax.numpy as jnp
from jax.experimental import pallas as pl
from jax.experimental.pallas import tpu as pltpu


# ----------------------------------------------------------------------------
# Pallas kernel: one time-chunk of the bidirectional recurrence + batched gather
# ----------------------------------------------------------------------------
def bilstm_chunk_kernel(xf_ref, xb_ref,
                        wih_f_ref, wih_b_ref, bih_f_ref, bih_b_ref,
                        whh_f_ref, whh_b_ref,
                        gf_ref, gb_ref, gbias_ref,
                        outf_ref, outb_ref,
                        state_ref, gxf_ref, gxb_ref, hf_hist_ref, hb_hist_ref,
                        *, mxu_dtype):
    """Shapes (per chunk):
       xf/xb_ref      : (tc, B, IN)   fwd chunk / time-reversed bwd chunk
       wih_*_ref      : (IN, 4H)      input weights (transposed), per direction
       bih_*_ref      : (1, 4H)       folded LSTM biases, per direction
       whh_*_ref      : (H, 4H)       recurrent weights (transposed)
       gf/gb_ref      : (H, OUT_pad)  halves of the gather Linear weight (transposed)
       gbias_ref      : (1, OUT_pad)
       outf/outb_ref  : (tc, B, OUT_pad)
       state_ref      : (4, B, H)     [hf, cf, hb, cb] carried across grid steps
       gxf/gxb_ref    : (tc, B, 4H)   per-chunk input projections (scratch)
       hf/hb_hist_ref : (tc, B, H)    per-chunk h history (scratch)
    """
    tc, B, IN = xf_ref.shape
    H = whh_f_ref.shape[0]
    G = 4 * H
    f32 = jnp.float32

    @pl.when(pl.program_id(0) == 0)
    def _init():
        state_ref[...] = jnp.zeros_like(state_ref)

    # ---- input projection for this chunk: one big MXU matmul per direction,
    #      off the serial h-dependence chain.
    xf = xf_ref[...].reshape(tc * B, IN).astype(mxu_dtype)
    xb = xb_ref[...].reshape(tc * B, IN).astype(mxu_dtype)
    gxf_ref[...] = (jnp.dot(xf, wih_f_ref[...].astype(mxu_dtype),
                            preferred_element_type=f32)
                    + bih_f_ref[...]).reshape(tc, B, G)
    gxb_ref[...] = (jnp.dot(xb, wih_b_ref[...].astype(mxu_dtype),
                            preferred_element_type=f32)
                    + bih_b_ref[...]).reshape(tc, B, G)

    # ---- loop-invariant weight loads / activation constants (hoisted).
    whh_f = whh_f_ref[...].astype(mxu_dtype)
    whh_b = whh_b_ref[...].astype(mxu_dtype)

    # sigmoid(x) = 0.5*(1+tanh(x/2)): one tanh over the full (B,4H) vreg covers the
    # i/f/o sigmoid gates AND the g tanh gate (halves EUP lanes per step).
    lane = jax.lax.broadcasted_iota(jnp.int32, (B, G), 1)
    is_g = (lane >= 2 * H) & (lane < 3 * H)
    sc = jnp.where(is_g, 1.0, 0.5).astype(f32)    # pre-tanh scale
    blend_m = sc                                  # post-tanh scale
    blend_a = jnp.where(is_g, 0.0, 0.5).astype(f32)

    def cell(gx_t, h, c, whhT):
        gates = gx_t + jnp.dot(h.astype(mxu_dtype), whhT, preferred_element_type=f32)
        act = jnp.tanh(gates * sc) * blend_m + blend_a
        i_g = act[:, 0 * H:1 * H]
        f_g = act[:, 1 * H:2 * H]
        g_g = act[:, 2 * H:3 * H]
        o_g = act[:, 3 * H:4 * H]
        c_new = f_g * c + i_g * g_g
        h_new = o_g * jnp.tanh(c_new)
        return h_new, c_new

    def step(t, carry):
        hf, cf, hb, cb = carry
        hf, cf = cell(gxf_ref[t], hf, cf, whh_f)
        hb, cb = cell(gxb_ref[t], hb, cb, whh_b)
        hf_hist_ref[t] = hf          # pure stores; no per-step gather matmuls
        hb_hist_ref[t] = hb
        return hf, cf, hb, cb

    carry0 = (state_ref[0], state_ref[1], state_ref[2], state_ref[3])
    hf, cf, hb, cb = jax.lax.fori_loop(
        0, tc, step, carry0, unroll=True if tc <= 16 else 2)
    state_ref[0] = hf
    state_ref[1] = cf
    state_ref[2] = hb
    state_ref[3] = cb

    # ---- batched, lane-dense gather: one MXU-friendly matmul per direction per chunk.
    hf_all = hf_hist_ref[...].reshape(tc * B, H).astype(mxu_dtype)
    hb_all = hb_hist_ref[...].reshape(tc * B, H).astype(mxu_dtype)
    out_pad = outf_ref.shape[-1]
    outf_ref[...] = (jnp.dot(hf_all, gf_ref[...].astype(mxu_dtype),
                             preferred_element_type=f32)
                     + gbias_ref[...]).reshape(tc, B, out_pad)
    outb_ref[...] = jnp.dot(hb_all, gb_ref[...].astype(mxu_dtype),
                            preferred_element_type=f32).reshape(tc, B, out_pad)


# ----------------------------------------------------------------------------
# Wrapper (full module forward)
# ----------------------------------------------------------------------------
def bidirectional_lstm_forward(x, params, *, time_chunk=8, mxu_dtype=jnp.float32):
    """x: (T, B, IN) -> (T, B, OUT).  Matches PyTorch BidirectionalLSTM.forward."""
    T, B, IN = x.shape
    H = params["whhT_f"].shape[0]
    OUT = params["gatherT"].shape[1]
    G = 4 * H
    f32 = jnp.float32

    # ---- hardware-friendly padding --------------------------------------------
    B_pad = -(-B // 8) * 8                     # f32 sublane multiple
    OUT_pad = max(-(-OUT // 128) * 128, 128)   # lane-dense output slab
    tc = max(1, min(time_chunk, T))
    nT = -(-T // tc)
    T_pad = nT * tc

    # fwd stream = x (padded at the end); bwd stream = time-reversed x (padded at the
    # end) so BOTH directions stream front-to-back and start from a clean zero state.
    xf = jnp.zeros((T_pad, B_pad, IN), f32).at[:T, :B].set(x)
    xb = jnp.zeros((T_pad, B_pad, IN), f32).at[:T, :B].set(x[::-1])

    gT = params["gatherT"]                      # (2H, OUT)
    g_f = jnp.zeros((H, OUT_pad), f32).at[:, :OUT].set(gT[:H])
    g_b = jnp.zeros((H, OUT_pad), f32).at[:, :OUT].set(gT[H:])
    g_bias = jnp.zeros((1, OUT_pad), f32).at[:, :OUT].set(params["gather_b"])

    def full_spec(a):
        return pl.BlockSpec(a.shape, lambda i, _nd=a.ndim: (0,) * _nd)

    chunk_in = pl.BlockSpec((tc, B_pad, IN), lambda i: (i, 0, 0))
    chunk_out = pl.BlockSpec((tc, B_pad, OUT_pad), lambda i: (i, 0, 0))

    # Rough VMEM footprint (bytes) -> explicit scoped-VMEM limit with headroom.
    est = 4 * (2 * 2 * tc * B_pad * IN                       # streamed x chunks (x2 buf)
               + 2 * IN * G + 2 * H * G + 2 * H * OUT_pad    # resident weights
               + 2 * G + OUT_pad                             # biases
               + 2 * 2 * tc * B_pad * OUT_pad                # output chunks (x2 buf)
               + 4 * B_pad * H                               # carried state
               + 2 * tc * B_pad * G + 2 * tc * B_pad * H)    # gx / h-history scratch
    vmem_limit = int(min(max(2 * est + (4 << 20), 16 << 20), 64 << 20))

    kernel = functools.partial(bilstm_chunk_kernel, mxu_dtype=mxu_dtype)

    out_f, out_b = pl.pallas_call(
        kernel,
        out_shape=(jax.ShapeDtypeStruct((T_pad, B_pad, OUT_pad), f32),
                   jax.ShapeDtypeStruct((T_pad, B_pad, OUT_pad), f32)),
        grid_spec=pltpu.PrefetchScalarGridSpec(
            num_scalar_prefetch=0,
            grid=(nT,),
            in_specs=[chunk_in, chunk_in,
                      full_spec(params["wihT_f"]), full_spec(params["wihT_b"]),
                      full_spec(params["bias_f"]), full_spec(params["bias_b"]),
                      full_spec(params["whhT_f"]), full_spec(params["whhT_b"]),
                      full_spec(g_f), full_spec(g_b), full_spec(g_bias)],
            out_specs=[chunk_out, chunk_out],
            scratch_shapes=[pltpu.VMEM((4, B_pad, H), f32),    # hf, cf, hb, cb
                            pltpu.VMEM((tc, B_pad, G), f32),   # gx fwd chunk
                            pltpu.VMEM((tc, B_pad, G), f32),   # gx bwd chunk
                            pltpu.VMEM((tc, B_pad, H), f32),   # hf history
                            pltpu.VMEM((tc, B_pad, H), f32)]), # hb history
        compiler_params=pltpu.CompilerParams(
            dimension_semantics=("arbitrary",),
            vmem_limit_bytes=vmem_limit),
    )(xf, xb,
      params["wihT_f"], params["wihT_b"], params["bias_f"], params["bias_b"],
      params["whhT_f"], params["whhT_b"], g_f, g_b, g_bias)

    # out_b row j holds the backward contribution for original time T-1-j.
    out = out_f[:T] + out_b[:T][::-1]
    return out[:, :B, :OUT]


# ----------------------------------------------------------------------------
# Pure-JAX reference (for correctness check)
# ----------------------------------------------------------------------------
def _lstm_dir_ref(x, wihT, whhT, bias, H):
    B = x.shape[1]

    def step(carry, x_t):
        h, c = carry
        gates = x_t @ wihT + h @ whhT + bias
        i_g = jax.nn.sigmoid(gates[:, :H])
        f_g = jax.nn.sigmoid(gates[:, H:2 * H])
        g_g = jnp.tanh(gates[:, 2 * H:3 * H])
        o_g = jax.nn.sigmoid(gates[:, 3 * H:])
        c = f_g * c + i_g * g_g
        h = o_g * jnp.tanh(c)
        return (h, c), h

    init = (jnp.zeros((B, H), jnp.float32), jnp.zeros((B, H), jnp.float32))
    _, ys = jax.lax.scan(step, init, x)
    return ys


def bidirectional_lstm_ref(x, params):
    H = params["whhT_f"].shape[0]
    y_f = _lstm_dir_ref(x, params["wihT_f"], params["whhT_f"], params["bias_f"], H)
    y_b = _lstm_dir_ref(x[::-1], params["wihT_b"], params["whhT_b"],
                        params["bias_b"], H)[::-1]
    y = jnp.concatenate([y_f, y_b], axis=-1)
    T, B, h2 = y.shape
    out = y.reshape(-1, h2) @ params["gatherT"] + params["gather_b"]
    return out.reshape(T, B, -1)


# ----------------------------------------------------------------------------
# Deterministic parameter init (matches nn.LSTM / nn.Linear shapes)
# ----------------------------------------------------------------------------
def init_params(key, in_size, hidden_size, out_size):
    H = hidden_size
    k_lstm = 1.0 / jnp.sqrt(H)
    k_lin = 1.0 / jnp.sqrt(2.0 * H)
    keys = jax.random.split(key, 10)

    def u(k, shape, bound):
        return jax.random.uniform(k, shape, jnp.float32, -bound, bound)

    # PyTorch stores weight_ih (4H, IN), weight_hh (4H, H); we store transposed.
    return {
        "wihT_f": u(keys[0], (in_size, 4 * H), k_lstm),
        "whhT_f": u(keys[1], (H, 4 * H), k_lstm),
        "bias_f": u(keys[2], (1, 4 * H), k_lstm) + u(keys[3], (1, 4 * H), k_lstm),
        "wihT_b": u(keys[4], (in_size, 4 * H), k_lstm),
        "whhT_b": u(keys[5], (H, 4 * H), k_lstm),
        "bias_b": u(keys[6], (1, 4 * H), k_lstm) + u(keys[7], (1, 4 * H), k_lstm),
        # nn.Linear(2H, OUT): weight (OUT, 2H) -> stored transposed (2H, OUT)
        "gatherT": u(keys[8], (2 * H, out_size), k_lin),
        "gather_b": u(keys[9], (1, out_size), k_lin),
    }


# ----------------------------------------------------------------------------
if __name__ == "__main__":
    T, B, IN, H, OUT = 8, 4, 16, 32, 16

    key = jax.random.PRNGKey(0)
    kx, kp = jax.random.split(key)
    x = jax.random.normal(kx, (T, B, IN), jnp.float32)
    params = init_params(kp, IN, H, OUT)

    fwd = jax.jit(functools.partial(bidirectional_lstm_forward, time_chunk=8,
                                    mxu_dtype=jnp.float32))
    out = jax.block_until_ready(fwd(x, params))

    ref = bidirectional_lstm_ref(x, params)
    assert out.shape == (T, B, OUT), out.shape
    assert jnp.allclose(out, ref, rtol=1e-3, atol=2e-4), (
        float(jnp.max(jnp.abs(out - ref))))

    print("KERNEL_OK")
</pallas_src>

<mosaic_0001>
module attributes {stable_mosaic.version = 11 : i64} {
  func.func @bilstm_chunk_kernel(%arg0: i32, %arg1: memref<8x8x16xf32, #tpu.memory_space<vmem>>, %arg2: memref<8x8x16xf32, #tpu.memory_space<vmem>>, %arg3: memref<16x128xf32, #tpu.memory_space<vmem>>, %arg4: memref<16x128xf32, #tpu.memory_space<vmem>>, %arg5: memref<1x128xf32, #tpu.memory_space<vmem>>, %arg6: memref<1x128xf32, #tpu.memory_space<vmem>>, %arg7: memref<32x128xf32, #tpu.memory_space<vmem>>, %arg8: memref<32x128xf32, #tpu.memory_space<vmem>>, %arg9: memref<32x128xf32, #tpu.memory_space<vmem>>, %arg10: memref<32x128xf32, #tpu.memory_space<vmem>>, %arg11: memref<1x128xf32, #tpu.memory_space<vmem>>, %arg12: memref<8x8x128xf32, #tpu.memory_space<vmem>>, %arg13: memref<8x8x128xf32, #tpu.memory_space<vmem>>, %arg14: memref<4x8x32xf32, #tpu.memory_space<vmem>>, %arg15: memref<8x8x128xf32, #tpu.memory_space<vmem>>, %arg16: memref<8x8x128xf32, #tpu.memory_space<vmem>>, %arg17: memref<8x8x32xf32, #tpu.memory_space<vmem>>, %arg18: memref<8x8x32xf32, #tpu.memory_space<vmem>>) attributes {dimension_semantics = [#tpu.dimension_semantics<arbitrary>], iteration_bounds = array<i64: 1>, scalar_prefetch = 0 : i64, scratch_operands = 5 : i64, tpu.core_type = #tpu.core_type<tc>, window_params = [{transform_indices = @transform_0, window_bounds = array<i64: 8, 8, 16>}, {transform_indices = @transform_1, window_bounds = array<i64: 8, 8, 16>}, {pipeline_mode = #tpu.pipeline_mode<synchronous>, transform_indices = @transform_2, window_bounds = array<i64: 16, 128>}, {pipeline_mode = #tpu.pipeline_mode<synchronous>, transform_indices = @transform_3, window_bounds = array<i64: 16, 128>}, {pipeline_mode = #tpu.pipeline_mode<synchronous>, transform_indices = @transform_4, window_bounds = array<i64: 1, 128>}, {pipeline_mode = #tpu.pipeline_mode<synchronous>, transform_indices = @transform_5, window_bounds = array<i64: 1, 128>}, {pipeline_mode = #tpu.pipeline_mode<synchronous>, transform_indices = @transform_6, window_bounds = array<i64: 32, 128>}, {pipeline_mode = #tpu.pipeline_mode<synchronous>, transform_indices = @transform_7, window_bounds = array<i64: 32, 128>}, {pipeline_mode = #tpu.pipeline_mode<synchronous>, transform_indices = @transform_8, window_bounds = array<i64: 32, 128>}, {pipeline_mode = #tpu.pipeline_mode<synchronous>, transform_indices = @transform_9, window_bounds = array<i64: 32, 128>}, {pipeline_mode = #tpu.pipeline_mode<synchronous>, transform_indices = @transform_10, window_bounds = array<i64: 1, 128>}, {transform_indices = @transform_11, window_bounds = array<i64: 8, 8, 128>}, {transform_indices = @transform_12, window_bounds = array<i64: 8, 8, 128>}]} {
    %c0_i32 = arith.constant 0 : i32
    %0 = arith.cmpi eq, %arg0, %c0_i32 : i32
    %1 = arith.extui %0 : i1 to i32
    %c0_i32_0 = arith.constant 0 : i32
    %2 = arith.cmpi ne, %1, %c0_i32_0 : i32
    scf.if %2 {
      %cst_151 = arith.constant 0.000000e+00 : f32
      %422 = vector.broadcast %cst_151 : f32 to vector<4x8x32xf32>
      %c0_152 = arith.constant 0 : index
      %c0_153 = arith.constant 0 : index
      %c0_154 = arith.constant 0 : index
      %423 = vector.load %arg14[%c0_152, %c0_153, %c0_154] : memref<4x8x32xf32, #tpu.memory_space<vmem>>, vector<4x8x32xf32>
      tpu.vector_store %arg14[%c0_152, %c0_153, %c0_154], %422 {strides = array<i32>} : memref<4x8x32xf32, #tpu.memory_space<vmem>>, vector<4x8x32xf32>,
    } else {
    }
    %c0 = arith.constant 0 : index
    %c0_1 = arith.constant 0 : index
    %c0_2 = arith.constant 0 : index
    %3 = vector.load %arg1[%c0, %c0_1, %c0_2] : memref<8x8x16xf32, #tpu.memory_space<vmem>>, vector<8x8x16xf32>
    %4 = vector.shape_cast %3 : vector<8x8x16xf32> to vector<64x16xf32>
    %c0_3 = arith.constant 0 : index
    %c0_4 = arith.constant 0 : index
    %c0_5 = arith.constant 0 : index
    %5 = vector.load %arg2[%c0_3, %c0_4, %c0_5] : memref<8x8x16xf32, #tpu.memory_space<vmem>>, vector<8x8x16xf32>
    %6 = vector.shape_cast %5 : vector<8x8x16xf32> to vector<64x16xf32>
    %c0_6 = arith.constant 0 : index
    %c0_7 = arith.constant 0 : index
    %7 = vector.load %arg3[%c0_6, %c0_7] : memref<16x128xf32, #tpu.memory_space<vmem>>, vector<16x128xf32>
    %cst = arith.constant dense<0.000000e+00> : vector<64x128xf32>
    %8 = tpu.matmul %4, %7, %cst {dimension_numbers = #tpu.dot_dimension_numbers<[1], [0], [0], [1], [0, 0, 1, 1], [], []>} : vector<64x16xf32>, vector<16x128xf32>, vector<64x128xf32> -> vector<64x128xf32>
    %c0_8 = arith.constant 0 : index
    %c0_9 = arith.constant 0 : index
    %9 = vector.load %arg5[%c0_8, %c0_9] : memref<1x128xf32, #tpu.memory_space<vmem>>, vector<1x128xf32>
    %10 = vector.broadcast %9 : vector<1x128xf32> to vector<64x128xf32>
    %11 = arith.addf %8, %10 : vector<64x128xf32>
    %12 = vector.shape_cast %11 : vector<64x128xf32> to vector<8x8x128xf32>
    %c0_10 = arith.constant 0 : index
    %c0_11 = arith.constant 0 : index
    %c0_12 = arith.constant 0 : index
    %13 = vector.load %arg15[%c0_10, %c0_11, %c0_12] : memref<8x8x128xf32, #tpu.memory_space<vmem>>, vector<8x8x128xf32>
    tpu.vector_store %arg15[%c0_10, %c0_11, %c0_12], %12 {strides = array<i32>} : memref<8x8x128xf32, #tpu.memory_space<vmem>>, vector<8x8x128xf32>,
    %c0_13 = arith.constant 0 : index
    %c0_14 = arith.constant 0 : index
    %14 = vector.load %arg4[%c0_13, %c0_14] : memref<16x128xf32, #tpu.memory_space<vmem>>, vector<16x128xf32>
    %cst_15 = arith.constant dense<0.000000e+00> : vector<64x128xf32>
    %15 = tpu.matmul %6, %14, %cst_15 {dimension_numbers = #tpu.dot_dimension_numbers<[1], [0], [0], [1], [0, 0, 1, 1], [], []>} : vector<64x16xf32>, vector<16x128xf32>, vector<64x128xf32> -> vector<64x128xf32>
    %c0_16 = arith.constant 0 : index
    %c0_17 = arith.constant 0 : index
    %16 = vector.load %arg6[%c0_16, %c0_17] : memref<1x128xf32, #tpu.memory_space<vmem>>, vector<1x128xf32>
    %17 = vector.broadcast %16 : vector<1x128xf32> to vector<64x128xf32>
    %18 = arith.addf %15, %17 : vector<64x128xf32>
    %19 = vector.shape_cast %18 : vector<64x128xf32> to vector<8x8x128xf32>
    %c0_18 = arith.constant 0 : index
    %c0_19 = arith.constant 0 : index
    %c0_20 = arith.constant 0 : index
    %20 = vector.load %arg16[%c0_18, %c0_19, %c0_20] : memref<8x8x128xf32, #tpu.memory_space<vmem>>, vector<8x8x128xf32>
    tpu.vector_store %arg16[%c0_18, %c0_19, %c0_20], %19 {strides = array<i32>} : memref<8x8x128xf32, #tpu.memory_space<vmem>>, vector<8x8x128xf32>,
    %c0_21 = arith.constant 0 : index
    %c0_22 = arith.constant 0 : index
    %21 = vector.load %arg7[%c0_21, %c0_22] : memref<32x128xf32, #tpu.memory_space<vmem>>, vector<32x128xf32>
    %c0_23 = arith.constant 0 : index
    %c0_24 = arith.constant 0 : index
    %22 = vector.load %arg8[%c0_23, %c0_24] : memref<32x128xf32, #tpu.memory_space<vmem>>, vector<32x128xf32>
    %23 = tpu.iota {dimensions = array<i32: 1>} : vector<8x128xi32>
    %c64_i32 = arith.constant 64 : i32
    %24 = vector.broadcast %c64_i32 : i32 to vector<8x128xi32>
    %25 = arith.cmpi sge, %23, %24 : vector<8x128xi32>
    %c96_i32 = arith.constant 96 : i32
    %26 = vector.broadcast %c96_i32 : i32 to vector<8x128xi32>
    %27 = arith.cmpi slt, %23, %26 : vector<8x128xi32>
    %28 = arith.andi %25, %27 : vector<8x128xi1>
    %cst_25 = arith.constant 1.000000e+00 : f32
    %cst_26 = arith.constant 5.000000e-01 : f32
    %29 = vector.broadcast %cst_25 : f32 to vector<8x128xf32>
    %30 = vector.broadcast %cst_26 : f32 to vector<8x128xf32>
    %31 = arith.select %28, %29, %30 : vector<8x128xi1>, vector<8x128xf32>
    %cst_27 = arith.constant 0.000000e+00 : f32
    %cst_28 = arith.constant 5.000000e-01 : f32
    %32 = vector.broadcast %cst_27 : f32 to vector<8x128xf32>
    %33 = vector.broadcast %cst_28 : f32 to vector<8x128xf32>
    %34 = arith.select %28, %32, %33 : vector<8x128xi1>, vector<8x128xf32>
    %c0_29 = arith.constant 0 : index
    %c0_30 = arith.constant 0 : index
    %c0_31 = arith.constant 0 : index
    %35 = vector.load %arg14[%c0_29, %c0_30, %c0_31] : memref<4x8x32xf32, #tpu.memory_space<vmem>>, vector<1x8x32xf32>
    %36 = vector.shape_cast %35 : vector<1x8x32xf32> to vector<8x32xf32>
    %c1 = arith.constant 1 : index
    %c0_32 = arith.constant 0 : index
    %c0_33 = arith.constant 0 : index
    %37 = vector.load %arg14[%c1, %c0_32, %c0_33] : memref<4x8x32xf32, #tpu.memory_space<vmem>>, vector<1x8x32xf32>
    %38 = vector.shape_cast %37 : vector<1x8x32xf32> to vector<8x32xf32>
    %c2 = arith.constant 2 : index
    %c0_34 = arith.constant 0 : index
    %c0_35 = arith.constant 0 : index
    %39 = vector.load %arg14[%c2, %c0_34, %c0_35] : memref<4x8x32xf32, #tpu.memory_space<vmem>>, vector<1x8x32xf32>
    %40 = vector.shape_cast %39 : vector<1x8x32xf32> to vector<8x32xf32>
    %c3 = arith.constant 3 : index
    %c0_36 = arith.constant 0 : index
    %c0_37 = arith.constant 0 : index
    %41 = vector.load %arg14[%c3, %c0_36, %c0_37] : memref<4x8x32xf32, #tpu.memory_space<vmem>>, vector<1x8x32xf32>
    %42 = vector.shape_cast %41 : vector<1x8x32xf32> to vector<8x32xf32>
    %c0_i32_38 = arith.constant 0 : i32
    %43 = arith.index_cast %c0_i32_38 : i32 to index
    %c0_39 = arith.constant 0 : index
    %c0_40 = arith.constant 0 : index
    %44 = vector.load %arg15[%43, %c0_39, %c0_40] : memref<8x8x128xf32, #tpu.memory_space<vmem>>, vector<1x8x128xf32>
    %45 = vector.shape_cast %44 : vector<1x8x128xf32> to vector<8x128xf32>
    %cst_41 = arith.constant dense<0.000000e+00> : vector<8x128xf32>
    %46 = tpu.matmul %36, %21, %cst_41 {dimension_numbers = #tpu.dot_dimension_numbers<[1], [0], [0], [1], [0, 0, 1, 1], [], []>} : vector<8x32xf32>, vector<32x128xf32>, vector<8x128xf32> -> vector<8x128xf32>
    %47 = arith.addf %45, %46 : vector<8x128xf32>
    %48 = arith.mulf %47, %31 : vector<8x128xf32>
    %49 = math.tanh %48 : vector<8x128xf32>
    %50 = arith.mulf %49, %31 : vector<8x128xf32>
    %51 = arith.addf %50, %34 : vector<8x128xf32>
    %52 = vector.extract_strided_slice %51 {offsets = [0, 0], sizes = [8, 32], strides = [1, 1]} : vector<8x128xf32> to vector<8x32xf32>
    %53 = vector.extract_strided_slice %51 {offsets = [0, 32], sizes = [8, 32], strides = [1, 1]} : vector<8x128xf32> to vector<8x32xf32>
    %54 = vector.extract_strided_slice %51 {offsets = [0, 64], sizes = [8, 32], strides = [1, 1]} : vector<8x128xf32> to vector<8x32xf32>
    %55 = vector.extract_strided_slice %51 {offsets = [0, 96], sizes = [8, 32], strides = [1, 1]} : vector<8x128xf32> to vector<8x32xf32>
    %56 = arith.mulf %53, %38 : vector<8x32xf32>
    %57 = arith.mulf %52, %54 : vector<8x32xf32>
    %58 = arith.addf %56, %57 : vector<8x32xf32>
    %59 = math.tanh %58 : vector<8x32xf32>
    %60 = arith.mulf %55, %59 : vector<8x32xf32>
    %61 = arith.index_cast %c0_i32_38 : i32 to index
    %c0_42 = arith.constant 0 : index
    %c0_43 = arith.constant 0 : index
    %62 = vector.load %arg16[%61, %c0_42, %c0_43] : memref<8x8x128xf32, #tpu.memory_space<vmem>>, vector<1x8x128xf32>
    %63 = vector.shape_cast %62 : vector<1x8x128xf32> to vector<8x128xf32>
    %cst_44 = arith.constant dense<0.000000e+00> : vector<8x128xf32>
    %64 = tpu.matmul %40, %22, %cst_44 {dimension_numbers = #tpu.dot_dimension_numbers<[1], [0], [0], [1], [0, 0, 1, 1], [], []>} : vector<8x32xf32>, vector<32x128xf32>, vector<8x128xf32> -> vector<8x128xf32>
    %65 = arith.addf %63, %64 : vector<8x128xf32>
    %66 = arith.mulf %65, %31 : vector<8x128xf32>
    %67 = math.tanh %66 : vector<8x128xf32>
    %68 = arith.mulf %67, %31 : vector<8x128xf32>
    %69 = arith.addf %68, %34 : vector<8x128xf32>
    %70 = vector.extract_strided_slice %69 {offsets = [0, 0], sizes = [8, 32], strides = [1, 1]} : vector<8x128xf32> to vector<8x32xf32>
    %71 = vector.extract_strided_slice %69 {offsets = [0, 32], sizes = [8, 32], strides = [1, 1]} : vector<8x128xf32> to vector<8x32xf32>
    %72 = vector.extract_strided_slice %69 {offsets = [0, 64], sizes = [8, 32], strides = [1, 1]} : vector<8x128xf32> to vector<8x32xf32>
    %73 = vector.extract_strided_slice %69 {offsets = [0, 96], sizes = [8, 32], strides = [1, 1]} : vector<8x128xf32> to vector<8x32xf32>
    %74 = arith.mulf %71, %42 : vector<8x32xf32>
    %75 = arith.mulf %70, %72 : vector<8x32xf32>
    %76 = arith.addf %74, %75 : vector<8x32xf32>
    %77 = math.tanh %76 : vector<8x32xf32>
    %78 = arith.mulf %73, %77 : vector<8x32xf32>
    %79 = arith.index_cast %c0_i32_38 : i32 to index
    %c0_45 = arith.constant 0 : index
    %c0_46 = arith.constant 0 : index
    %80 = vector.load %arg17[%79, %c0_45, %c0_46] : memref<8x8x32xf32, #tpu.memory_space<vmem>>, vector<1x8x32xf32>
    %81 = vector.shape_cast %80 : vector<1x8x32xf32> to vector<8x32xf32>
    %82 = vector.shape_cast %60 : vector<8x32xf32> to vector<1x8x32xf32>
    tpu.vector_store %arg17[%79, %c0_45, %c0_46], %82 {strides = array<i32>} : memref<8x8x32xf32, #tpu.memory_space<vmem>>, vector<1x8x32xf32>,
    %83 = arith.index_cast %c0_i32_38 : i32 to index
    %c0_47 = arith.constant 0 : index
    %c0_48 = arith.constant 0 : index
    %84 = vector.load %arg18[%83, %c0_47, %c0_48] : memref<8x8x32xf32, #tpu.memory_space<vmem>>, vector<1x8x32xf32>
    %85 = vector.shape_cast %84 : vector<1x8x32xf32> to vector<8x32xf32>
    %86 = vector.shape_cast %78 : vector<8x32xf32> to vector<1x8x32xf32>
    tpu.vector_store %arg18[%83, %c0_47, %c0_48], %86 {strides = array<i32>} : memref<8x8x32xf32, #tpu.memory_space<vmem>>, vector<1x8x32xf32>,
    %c1_i32 = arith.constant 1 : i32
    %87 = arith.index_cast %c1_i32 : i32 to index
    %c0_49 = arith.constant 0 : index
    %c0_50 = arith.constant 0 : index
    %88 = vector.load %arg15[%87, %c0_49, %c0_50] : memref<8x8x128xf32, #tpu.memory_space<vmem>>, vector<1x8x128xf32>
    %89 = vector.shape_cast %88 : vector<1x8x128xf32> to vector<8x128xf32>
    %cst_51 = arith.constant dense<0.000000e+00> : vector<8x128xf32>
    %90 = tpu.matmul %60, %21, %cst_51 {dimension_numbers = #tpu.dot_dimension_numbers<[1], [0], [0], [1], [0, 0, 1, 1], [], []>} : vector<8x32xf32>, vector<32x128xf32>, vector<8x128xf32> -> vector<8x128xf32>
    %91 = arith.addf %89, %90 : vector<8x128xf32>
    %92 = arith.mulf %91, %31 : vector<8x128xf32>
    %93 = math.tanh %92 : vector<8x128xf32>
    %94 = arith.mulf %93, %31 : vector<8x128xf32>
    %95 = arith.addf %94, %34 : vector<8x128xf32>
    %96 = vector.extract_strided_slice %95 {offsets = [0, 0], sizes = [8, 32], strides = [1, 1]} : vector<8x128xf32> to vector<8x32xf32>
    %97 = vector.extract_strided_slice %95 {offsets = [0, 32], sizes = [8, 32], strides = [1, 1]} : vector<8x128xf32> to vector<8x32xf32>
    %98 = vector.extract_strided_slice %95 {offsets = [0, 64], sizes = [8, 32], strides = [1, 1]} : vector<8x128xf32> to vector<8x32xf32>
    %99 = vector.extract_strided_slice %95 {offsets = [0, 96], sizes = [8, 32], strides = [1, 1]} : vector<8x128xf32> to vector<8x32xf32>
    %100 = arith.mulf %97, %58 : vector<8x32xf32>
    %101 = arith.mulf %96, %98 : vector<8x32xf32>
    %102 = arith.addf %100, %101 : vector<8x32xf32>
    %103 = math.tanh %102 : vector<8x32xf32>
    %104 = arith.mulf %99, %103 : vector<8x32xf32>
    %105 = arith.index_cast %c1_i32 : i32 to index
    %c0_52 = arith.constant 0 : index
    %c0_53 = arith.constant 0 : index
    %106 = vector.load %arg16[%105, %c0_52, %c0_53] : memref<8x8x128xf32, #tpu.memory_space<vmem>>, vector<1x8x128xf32>
    %107 = vector.shape_cast %106 : vector<1x8x128xf32> to vector<8x128xf32>
    %cst_54 = arith.constant dense<0.000000e+00> : vector<8x128xf32>
    %108 = tpu.matmul %78, %22, %cst_54 {dimension_numbers = #tpu.dot_dimension_numbers<[1], [0], [0], [1], [0, 0, 1, 1], [], []>} : vector<8x32xf32>, vector<32x128xf32>, vector<8x128xf32> -> vector<8x128xf32>
    %109 = arith.addf %107, %108 : vector<8x128xf32>
    %110 = arith.mulf %109, %31 : vector<8x128xf32>
    %111 = math.tanh %110 : vector<8x128xf32>
    %112 = arith.mulf %111, %31 : vector<8x128xf32>
    %113 = arith.addf %112, %34 : vector<8x128xf32>
    %114 = vector.extract_strided_slice %113 {offsets = [0, 0], sizes = [8, 32], strides = [1, 1]} : vector<8x128xf32> to vector<8x32xf32>
    %115 = vector.extract_strided_slice %113 {offsets = [0, 32], sizes = [8, 32], strides = [1, 1]} : vector<8x128xf32> to vector<8x32xf32>
    %116 = vector.extract_strided_slice %113 {offsets = [0, 64], sizes = [8, 32], strides = [1, 1]} : vector<8x128xf32> to vector<8x32xf32>
    %117 = vector.extract_strided_slice %113 {offsets = [0, 96], sizes = [8, 32], strides = [1, 1]} : vector<8x128xf32> to vector<8x32xf32>
    %118 = arith.mulf %115, %76 : vector<8x32xf32>
    %119 = arith.mulf %114, %116 : vector<8x32xf32>
    %120 = arith.addf %118, %119 : vector<8x32xf32>
    %121 = math.tanh %120 : vector<8x32xf32>
    %122 = arith.mulf %117, %121 : vector<8x32xf32>
    %123 = arith.index_cast %c1_i32 : i32 to index
    %c0_55 = arith.constant 0 : index
    %c0_56 = arith.constant 0 : index
    %124 = vector.load %arg17[%123, %c0_55, %c0_56] : memref<8x8x32xf32, #tpu.memory_space<vmem>>, vector<1x8x32xf32>
    %125 = vector.shape_cast %124 : vector<1x8x32xf32> to vector<8x32xf32>
    %126 = vector.shape_cast %104 : vector<8x32xf32> to vector<1x8x32xf32>
    tpu.vector_store %arg17[%123, %c0_55, %c0_56], %126 {strides = array<i32>} : memref<8x8x32xf32, #tpu.memory_space<vmem>>, vector<1x8x32xf32>,
    %127 = arith.index_cast %c1_i32 : i32 to index
    %c0_57 = arith.constant 0 : index
    %c0_58 = arith.constant 0 : index
    %128 = vector.load %arg18[%127, %c0_57, %c0_58] : memref<8x8x32xf32, #tpu.memory_space<vmem>>, vector<1x8x32xf32>
    %129 = vector.shape_cast %128 : vector<1x8x32xf32> to vector<8x32xf32>
    %130 = vector.shape_cast %122 : vector<8x32xf32> to vector<1x8x32xf32>
    tpu.vector_store %arg18[%127, %c0_57, %c0_58], %130 {strides = array<i32>} : memref<8x8x32xf32, #tpu.memory_space<vmem>>, vector<1x8x32xf32>,
    %c2_i32 = arith.constant 2 : i32
    %131 = arith.index_cast %c2_i32 : i32 to index
    %c0_59 = arith.constant 0 : index
    %c0_60 = arith.constant 0 : index
    %132 = vector.load %arg15[%131, %c0_59, %c0_60] : memref<8x8x128xf32, #tpu.memory_space<vmem>>, vector<1x8x128xf32>
    %133 = vector.shape_cast %132 : vector<1x8x128xf32> to vector<8x128xf32>
    %cst_61 = arith.constant dense<0.000000e+00> : vector<8x128xf32>
    %134 = tpu.matmul %104, %21, %cst_61 {dimension_numbers = #tpu.dot_dimension_numbers<[1], [0], [0], [1], [0, 0, 1, 1], [], []>} : vector<8x32xf32>, vector<32x128xf32>, vector<8x128xf32> -> vector<8x128xf32>
    %135 = arith.addf %133, %134 : vector<8x128xf32>
    %136 = arith.mulf %135, %31 : vector<8x128xf32>
    %137 = math.tanh %136 : vector<8x128xf32>
    %138 = arith.mulf %137, %31 : vector<8x128xf32>
    %139 = arith.addf %138, %34 : vector<8x128xf32>
    %140 = vector.extract_strided_slice %139 {offsets = [0, 0], sizes = [8, 32], strides = [1, 1]} : vector<8x128xf32> to vector<8x32xf32>
    %141 = vector.extract_strided_slice %139 {offsets = [0, 32], sizes = [8, 32], strides = [1, 1]} : vector<8x128xf32> to vector<8x32xf32>
    %142 = vector.extract_strided_slice %139 {offsets = [0, 64], sizes = [8, 32], strides = [1, 1]} : vector<8x128xf32> to vector<8x32xf32>
    %143 = vector.extract_strided_slice %139 {offsets = [0, 96], sizes = [8, 32], strides = [1, 1]} : vector<8x128xf32> to vector<8x32xf32>
    %144 = arith.mulf %141, %102 : vector<8x32xf32>
    %145 = arith.mulf %140, %142 : vector<8x32xf32>
    %146 = arith.addf %144, %145 : vector<8x32xf32>
    %147 = math.tanh %146 : vector<8x32xf32>
    %148 = arith.mulf %143, %147 : vector<8x32xf32>
    %149 = arith.index_cast %c2_i32 : i32 to index
    %c0_62 = arith.constant 0 : index
    %c0_63 = arith.constant 0 : index
    %150 = vector.load %arg16[%149, %c0_62, %c0_63] : memref<8x8x128xf32, #tpu.memory_space<vmem>>, vector<1x8x128xf32>
    %151 = vector.shape_cast %150 : vector<1x8x128xf32> to vector<8x128xf32>
    %cst_64 = arith.constant dense<0.000000e+00> : vector<8x128xf32>
    %152 = tpu.matmul %122, %22, %cst_64 {dimension_numbers = #tpu.dot_dimension_numbers<[1], [0], [0], [1], [0, 0, 1, 1], [], []>} : vector<8x32xf32>, vector<32x128xf32>, vector<8x128xf32> -> vector<8x128xf32>
    %153 = arith.addf %151, %152 : vector<8x128xf32>
    %154 = arith.mulf %153, %31 : vector<8x128xf32>
    %155 = math.tanh %154 : vector<8x128xf32>
    %156 = arith.mulf %155, %31 : vector<8x128xf32>
    %157 = arith.addf %156, %34 : vector<8x128xf32>
    %158 = vector.extract_strided_slice %157 {offsets = [0, 0], sizes = [8, 32], strides = [1, 1]} : vector<8x128xf32> to vector<8x32xf32>
    %159 = vector.extract_strided_slice %157 {offsets = [0, 32], sizes = [8, 32], strides = [1, 1]} : vector<8x128xf32> to vector<8x32xf32>
    %160 = vector.extract_strided_slice %157 {offsets = [0, 64], sizes = [8, 32], strides = [1, 1]} : vector<8x128xf32> to vector<8x32xf32>
    %161 = vector.extract_strided_slice %157 {offsets = [0, 96], sizes = [8, 32], strides = [1, 1]} : vector<8x128xf32> to vector<8x32xf32>
    %162 = arith.mulf %159, %120 : vector<8x32xf32>
    %163 = arith.mulf %158, %160 : vector<8x32xf32>
    %164 = arith.addf %162, %163 : vector<8x32xf32>
    %165 = math.tanh %164 : vector<8x32xf32>
    %166 = arith.mulf %161, %165 : vector<8x32xf32>
    %167 = arith.index_cast %c2_i32 : i32 to index
    %c0_65 = arith.constant 0 : index
    %c0_66 = arith.constant 0 : index
    %168 = vector.load %arg17[%167, %c0_65, %c0_66] : memref<8x8x32xf32, #tpu.memory_space<vmem>>, vector<1x8x32xf32>
    %169 = vector.shape_cast %168 : vector<1x8x32xf32> to vector<8x32xf32>
    %170 = vector.shape_cast %148 : vector<8x32xf32> to vector<1x8x32xf32>
    tpu.vector_store %arg17[%167, %c0_65, %c0_66], %170 {strides = array<i32>} : memref<8x8x32xf32, #tpu.memory_space<vmem>>, vector<1x8x32xf32>,
    %171 = arith.index_cast %c2_i32 : i32 to index
    %c0_67 = arith.constant 0 : index
    %c0_68 = arith.constant 0 : index
    %172 = vector.load %arg18[%171, %c0_67, %c0_68] : memref<8x8x32xf32, #tpu.memory_space<vmem>>, vector<1x8x32xf32>
    %173 = vector.shape_cast %172 : vector<1x8x32xf32> to vector<8x32xf32>
    %174 = vector.shape_cast %166 : vector<8x32xf32> to vector<1x8x32xf32>
    tpu.vector_store %arg18[%171, %c0_67, %c0_68], %174 {strides = array<i32>} : memref<8x8x32xf32, #tpu.memory_space<vmem>>, vector<1x8x32xf32>,
    %c3_i32 = arith.constant 3 : i32
    %175 = arith.index_cast %c3_i32 : i32 to index
    %c0_69 = arith.constant 0 : index
    %c0_70 = arith.constant 0 : index
    %176 = vector.load %arg15[%175, %c0_69, %c0_70] : memref<8x8x128xf32, #tpu.memory_space<vmem>>, vector<1x8x128xf32>
    %177 = vector.shape_cast %176 : vector<1x8x128xf32> to vector<8x128xf32>
    %cst_71 = arith.constant dense<0.000000e+00> : vector<8x128xf32>
    %178 = tpu.matmul %148, %21, %cst_71 {dimension_numbers = #tpu.dot_dimension_numbers<[1], [0], [0], [1], [0, 0, 1, 1], [], []>} : vector<8x32xf32>, vector<32x128xf32>, vector<8x128xf32> -> vector<8x128xf32>
    %179 = arith.addf %177, %178 : vector<8x128xf32>
    %180 = arith.mulf %179, %31 : vector<8x128xf32>
    %181 = math.tanh %180 : vector<8x128xf32>
    %182 = arith.mulf %181, %31 : vector<8x128xf32>
    %183 = arith.addf %182, %34 : vector<8x128xf32>
    %184 = vector.extract_strided_slice %183 {offsets = [0, 0], sizes = [8, 32], strides = [1, 1]} : vector<8x128xf32> to vector<8x32xf32>
    %185 = vector.extract_strided_slice %183 {offsets = [0, 32], sizes = [8, 32], strides = [1, 1]} : vector<8x128xf32> to vector<8x32xf32>
    %186 = vector.extract_strided_slice %183 {offsets = [0, 64], sizes = [8, 32], strides = [1, 1]} : vector<8x128xf32> to vector<8x32xf32>
    %187 = vector.extract_strided_slice %183 {offsets = [0, 96], sizes = [8, 32], strides = [1, 1]} : vector<8x128xf32> to vector<8x32xf32>
    %188 = arith.mulf %185, %146 : vector<8x32xf32>
    %189 = arith.mulf %184, %186 : vector<8x32xf32>
    %190 = arith.addf %188, %189 : vector<8x32xf32>
    %191 = math.tanh %190 : vector<8x32xf32>
    %192 = arith.mulf %187, %191 : vector<8x32xf32>
    %193 = arith.index_cast %c3_i32 : i32 to index
    %c0_72 = arith.constant 0 : index
    %c0_73 = arith.constant 0 : index
    %194 = vector.load %arg16[%193, %c0_72, %c0_73] : memref<8x8x128xf32, #tpu.memory_space<vmem>>, vector<1x8x128xf32>
    %195 = vector.shape_cast %194 : vector<1x8x128xf32> to vector<8x128xf32>
    %cst_74 = arith.constant dense<0.000000e+00> : vector<8x128xf32>
    %196 = tpu.matmul %166, %22, %cst_74 {dimension_numbers = #tpu.dot_dimension_numbers<[1], [0], [0], [1], [0, 0, 1, 1], [], []>} : vector<8x32xf32>, vector<32x128xf32>, vector<8x128xf32> -> vector<8x128xf32>
    %197 = arith.addf %195, %196 : vector<8x128xf32>
    %198 = arith.mulf %197, %31 : vector<8x128xf32>
    %199 = math.tanh %198 : vector<8x128xf32>
    %200 = arith.mulf %199, %31 : vector<8x128xf32>
    %201 = arith.addf %200, %34 : vector<8x128xf32>
    %202 = vector.extract_strided_slice %201 {offsets = [0, 0], sizes = [8, 32], strides = [1, 1]} : vector<8x128xf32> to vector<8x32xf32>
    %203 = vector.extract_strided_slice %201 {offsets = [0, 32], sizes = [8, 32], strides = [1, 1]} : vector<8x128xf32> to vector<8x32xf32>
    %204 = vector.extract_strided_slice %201 {offsets = [0, 64], sizes = [8, 32], strides = [1, 1]} : vector<8x128xf32> to vector<8x32xf32>
    %205 = vector.extract_strided_slice %201 {offsets = [0, 96], sizes = [8, 32], strides = [1, 1]} : vector<8x128xf32> to vector<8x32xf32>
    %206 = arith.mulf %203, %164 : vector<8x32xf32>
    %207 = arith.mulf %202, %204 : vector<8x32xf32>
    %208 = arith.addf %206, %207 : vector<8x32xf32>
    %209 = math.tanh %208 : vector<8x32xf32>
    %210 = arith.mulf %205, %209 : vector<8x32xf32>
    %211 = arith.index_cast %c3_i32 : i32 to index
    %c0_75 = arith.constant 0 : index
    %c0_76 = arith.constant 0 : index
    %212 = vector.load %arg17[%211, %c0_75, %c0_76] : memref<8x8x32xf32, #tpu.memory_space<vmem>>, vector<1x8x32xf32>
    %213 = vector.shape_cast %212 : vector<1x8x32xf32> to vector<8x32xf32>
    %214 = vector.shape_cast %192 : vector<8x32xf32> to vector<1x8x32xf32>
    tpu.vector_store %arg17[%211, %c0_75, %c0_76], %214 {strides = array<i32>} : memref<8x8x32xf32, #tpu.memory_space<vmem>>, vector<1x8x32xf32>,
    %215 = arith.index_cast %c3_i32 : i32 to index
    %c0_77 = arith.constant 0 : index
    %c0_78 = arith.constant 0 : index
    %216 = vector.load %arg18[%215, %c0_77, %c0_78] : memref<8x8x32xf32, #tpu.memory_space<vmem>>, vector<1x8x32xf32>
    %217 = vector.shape_cast %216 : vector<1x8x32xf32> to vector<8x32xf32>
    %218 = vector.shape_cast %210 : vector<8x32xf32> to vector<1x8x32xf32>
    tpu.vector_store %arg18[%215, %c0_77, %c0_78], %218 {strides = array<i32>} : memref<8x8x32xf32, #tpu.memory_space<vmem>>, vector<1x8x32xf32>,
    %c4_i32 = arith.constant 4 : i32
    %219 = arith.index_cast %c4_i32 : i32 to index
    %c0_79 = arith.constant 0 : index
    %c0_80 = arith.constant 0 : index
    %220 = vector.load %arg15[%219, %c0_79, %c0_80] : memref<8x8x128xf32, #tpu.memory_space<vmem>>, vector<1x8x128xf32>
    %221 = vector.shape_cast %220 : vector<1x8x128xf32> to vector<8x128xf32>
    %cst_81 = arith.constant dense<0.000000e+00> : vector<8x128xf32>
    %222 = tpu.matmul %192, %21, %cst_81 {dimension_numbers = #tpu.dot_dimension_numbers<[1], [0], [0], [1], [0, 0, 1, 1], [], []>} : vector<8x32xf32>, vector<32x128xf32>, vector<8x128xf32> -> vector<8x128xf32>
    %223 = arith.addf %221, %222 : vector<8x128xf32>
    %224 = arith.mulf %223, %31 : vector<8x128xf32>
    %225 = math.tanh %224 : vector<8x128xf32>
    %226 = arith.mulf %225, %31 : vector<8x128xf32>
    %227 = arith.addf %226, %34 : vector<8x128xf32>
    %228 = vector.extract_strided_slice %227 {offsets = [0, 0], sizes = [8, 32], strides = [1, 1]} : vector<8x128xf32> to vector<8x32xf32>
    %229 = vector.extract_strided_slice %227 {offsets = [0, 32], sizes = [8, 32], strides = [1, 1]} : vector<8x128xf32> to vector<8x32xf32>
    %230 = vector.extract_strided_slice %227 {offsets = [0, 64], sizes = [8, 32], strides = [1, 1]} : vector<8x128xf32> to vector<8x32xf32>
    %231 = vector.extract_strided_slice %227 {offsets = [0, 96], sizes = [8, 32], strides = [1, 1]} : vector<8x128xf32> to vector<8x32xf32>
    %232 = arith.mulf %229, %190 : vector<8x32xf32>
    %233 = arith.mulf %228, %230 : vector<8x32xf32>
    %234 = arith.addf %232, %233 : vector<8x32xf32>
    %235 = math.tanh %234 : vector<8x32xf32>
    %236 = arith.mulf %231, %235 : vector<8x32xf32>
    %237 = arith.index_cast %c4_i32 : i32 to index
    %c0_82 = arith.constant 0 : index
    %c0_83 = arith.constant 0 : index
    %238 = vector.load %arg16[%237, %c0_82, %c0_83] : memref<8x8x128xf32, #tpu.memory_space<vmem>>, vector<1x8x128xf32>
    %239 = vector.shape_cast %238 : vector<1x8x128xf32> to vector<8x128xf32>
    %cst_84 = arith.constant dense<0.000000e+00> : vector<8x128xf32>
    %240 = tpu.matmul %210, %22, %cst_84 {dimension_numbers = #tpu.dot_dimension_numbers<[1], [0], [0], [1], [0, 0, 1, 1], [], []>} : vector<8x32xf32>, vector<32x128xf32>, vector<8x128xf32> -> vector<8x128xf32>
    %241 = arith.addf %239, %240 : vector<8x128xf32>
    %242 = arith.mulf %241, %31 : vector<8x128xf32>
    %243 = math.tanh %242 : vector<8x128xf32>
    %244 = arith.mulf %243, %31 : vector<8x128xf32>
    %245 = arith.addf %244, %34 : vector<8x128xf32>
    %246 = vector.extract_strided_slice %245 {offsets = [0, 0], sizes = [8, 32], strides = [1, 1]} : vector<8x128xf32> to vector<8x32xf32>
    %247 = vector.extract_strided_slice %245 {offsets = [0, 32], sizes = [8, 32], strides = [1, 1]} : vector<8x128xf32> to vector<8x32xf32>
    %248 = vector.extract_strided_slice %245 {offsets = [0, 64], sizes = [8, 32], strides = [1, 1]} : vector<8x128xf32> to vector<8x32xf32>
    %249 = vector.extract_strided_slice %245 {offsets = [0, 96], sizes = [8, 32], strides = [1, 1]} : vector<8x128xf32> to vector<8x32xf32>
    %250 = arith.mulf %247, %208 : vector<8x32xf32>
    %251 = arith.mulf %246, %248 : vector<8x32xf32>
    %252 = arith.addf %250, %251 : vector<8x32xf32>
    %253 = math.tanh %252 : vector<8x32xf32>
    %254 = arith.mulf %249, %253 : vector<8x32xf32>
    %255 = arith.index_cast %c4_i32 : i32 to index
    %c0_85 = arith.constant 0 : index
    %c0_86 = arith.constant 0 : index
    %256 = vector.load %arg17[%255, %c0_85, %c0_86] : memref<8x8x32xf32, #tpu.memory_space<vmem>>, vector<1x8x32xf32>
    %257 = vector.shape_cast %256 : vector<1x8x32xf32> to vector<8x32xf32>
    %258 = vector.shape_cast %236 : vector<8x32xf32> to vector<1x8x32xf32>
    tpu.vector_store %arg17[%255, %c0_85, %c0_86], %258 {strides = array<i32>} : memref<8x8x32xf32, #tpu.memory_space<vmem>>, vector<1x8x32xf32>,
    %259 = arith.index_cast %c4_i32 : i32 to index
    %c0_87 = arith.constant 0 : index
    %c0_88 = arith.constant 0 : index
    %260 = vector.load %arg18[%259, %c0_87, %c0_88] : memref<8x8x32xf32, #tpu.memory_space<vmem>>, vector<1x8x32xf32>
    %261 = vector.shape_cast %260 : vector<1x8x32xf32> to vector<8x32xf32>
    %262 = vector.shape_cast %254 : vector<8x32xf32> to vector<1x8x32xf32>
    tpu.vector_store %arg18[%259, %c0_87, %c0_88], %262 {strides = array<i32>} : memref<8x8x32xf32, #tpu.memory_space<vmem>>, vector<1x8x32xf32>,
    %c5_i32 = arith.constant 5 : i32
    %263 = arith.index_cast %c5_i32 : i32 to index
    %c0_89 = arith.constant 0 : index
    %c0_90 = arith.constant 0 : index
    %264 = vector.load %arg15[%263, %c0_89, %c0_90] : memref<8x8x128xf32, #tpu.memory_space<vmem>>, vector<1x8x128xf32>
    %265 = vector.shape_cast %264 : vector<1x8x128xf32> to vector<8x128xf32>
    %cst_91 = arith.constant dense<0.000000e+00> : vector<8x128xf32>
    %266 = tpu.matmul %236, %21, %cst_91 {dimension_numbers = #tpu.dot_dimension_numbers<[1], [0], [0], [1], [0, 0, 1, 1], [], []>} : vector<8x32xf32>, vector<32x128xf32>, vector<8x128xf32> -> vector<8x128xf32>
    %267 = arith.addf %265, %266 : vector<8x128xf32>
    %268 = arith.mulf %267, %31 : vector<8x128xf32>
    %269 = math.tanh %268 : vector<8x128xf32>
    %270 = arith.mulf %269, %31 : vector<8x128xf32>
    %271 = arith.addf %270, %34 : vector<8x128xf32>
    %272 = vector.extract_strided_slice %271 {offsets = [0, 0], sizes = [8, 32], strides = [1, 1]} : vector<8x128xf32> to vector<8x32xf32>
    %273 = vector.extract_strided_slice %271 {offsets = [0, 32], sizes = [8, 32], strides = [1, 1]} : vector<8x128xf32> to vector<8x32xf32>
    %274 = vector.extract_strided_slice %271 {offsets = [0, 64], sizes = [8, 32], strides = [1, 1]} : vector<8x128xf32> to vector<8x32xf32>
    %275 = vector.extract_strided_slice %271 {offsets = [0, 96], sizes = [8, 32], strides = [1, 1]} : vector<8x128xf32> to vector<8x32xf32>
    %276 = arith.mulf %273, %234 : vector<8x32xf32>
    %277 = arith.mulf %272, %274 : vector<8x32xf32>
    %278 = arith.addf %276, %277 : vector<8x32xf32>
    %279 = math.tanh %278 : vector<8x32xf32>
    %280 = arith.mulf %275, %279 : vector<8x32xf32>
    %281 = arith.index_cast %c5_i32 : i32 to index
    %c0_92 = arith.constant 0 : index
    %c0_93 = arith.constant 0 : index
    %282 = vector.load %arg16[%281, %c0_92, %c0_93] : memref<8x8x128xf32, #tpu.memory_space<vmem>>, vector<1x8x128xf32>
    %283 = vector.shape_cast %282 : vector<1x8x128xf32> to vector<8x128xf32>
    %cst_94 = arith.constant dense<0.000000e+00> : vector<8x128xf32>
    %284 = tpu.matmul %254, %22, %cst_94 {dimension_numbers = #tpu.dot_dimension_numbers<[1], [0], [0], [1], [0, 0, 1, 1], [], []>} : vector<8x32xf32>, vector<32x128xf32>, vector<8x128xf32> -> vector<8x128xf32>
    %285 = arith.addf %283, %284 : vector<8x128xf32>
    %286 = arith.mulf %285, %31 : vector<8x128xf32>
    %287 = math.tanh %286 : vector<8x128xf32>
    %288 = arith.mulf %287, %31 : vector<8x128xf32>
    %289 = arith.addf %288, %34 : vector<8x128xf32>
    %290 = vector.extract_strided_slice %289 {offsets = [0, 0], sizes = [8, 32], strides = [1, 1]} : vector<8x128xf32> to vector<8x32xf32>
    %291 = vector.extract_strided_slice %289 {offsets = [0, 32], sizes = [8, 32], strides = [1, 1]} : vector<8x128xf32> to vector<8x32xf32>
    %292 = vector.extract_strided_slice %289 {offsets = [0, 64], sizes = [8, 32], strides = [1, 1]} : vector<8x128xf32> to vector<8x32xf32>
    %293 = vector.extract_strided_slice %289 {offsets = [0, 96], sizes = [8, 32], strides = [1, 1]} : vector<8x128xf32> to vector<8x32xf32>
    %294 = arith.mulf %291, %252 : vector<8x32xf32>
    %295 = arith.mulf %290, %292 : vector<8x32xf32>
    %296 = arith.addf %294, %295 : vector<8x32xf32>
    %297 = math.tanh %296 : vector<8x32xf32>
    %298 = arith.mulf %293, %297 : vector<8x32xf32>
    %299 = arith.index_cast %c5_i32 : i32 to index
    %c0_95 = arith.constant 0 : index
    %c0_96 = arith.constant 0 : index
    %300 = vector.load %arg17[%299, %c0_95, %c0_96] : memref<8x8x32xf32, #tpu.memory_space<vmem>>, vector<1x8x32xf32>
    %301 = vector.shape_cast %300 : vector<1x8x32xf32> to vector<8x32xf32>
    %302 = vector.shape_cast %280 : vector<8x32xf32> to vector<1x8x32xf32>
    tpu.vector_store %arg17[%299, %c0_95, %c0_96], %302 {strides = array<i32>} : memref<8x8x32xf32, #tpu.memory_space<vmem>>, vector<1x8x32xf32>,
    %303 = arith.index_cast %c5_i32 : i32 to index
    %c0_97 = arith.constant 0 : index
    %c0_98 = arith.constant 0 : index
    %304 = vector.load %arg18[%303, %c0_97, %c0_98] : memref<8x8x32xf32, #tpu.memory_space<vmem>>, vector<1x8x32xf32>
    %305 = vector.shape_cast %304 : vector<1x8x32xf32> to vector<8x32xf32>
    %306 = vector.shape_cast %298 : vector<8x32xf32> to vector<1x8x32xf32>
    tpu.vector_store %arg18[%303, %c0_97, %c0_98], %306 {strides = array<i32>} : memref<8x8x32xf32, #tpu.memory_space<vmem>>, vector<1x8x32xf32>,
    %c6_i32 = arith.constant 6 : i32
    %307 = arith.index_cast %c6_i32 : i32 to index
    %c0_99 = arith.constant 0 : index
    %c0_100 = arith.constant 0 : index
    %308 = vector.load %arg15[%307, %c0_99, %c0_100] : memref<8x8x128xf32, #tpu.memory_space<vmem>>, vector<1x8x128xf32>
    %309 = vector.shape_cast %308 : vector<1x8x128xf32> to vector<8x128xf32>
    %cst_101 = arith.constant dense<0.000000e+00> : vector<8x128xf32>
    %310 = tpu.matmul %280, %21, %cst_101 {dimension_numbers = #tpu.dot_dimension_numbers<[1], [0], [0], [1], [0, 0, 1, 1], [], []>} : vector<8x32xf32>, vector<32x128xf32>, vector<8x128xf32> -> vector<8x128xf32>
    %311 = arith.addf %309, %310 : vector<8x128xf32>
    %312 = arith.mulf %311, %31 : vector<8x128xf32>
    %313 = math.tanh %312 : vector<8x128xf32>
    %314 = arith.mulf %313, %31 : vector<8x128xf32>
    %315 = arith.addf %314, %34 : vector<8x128xf32>
    %316 = vector.extract_strided_slice %315 {offsets = [0, 0], sizes = [8, 32], strides = [1, 1]} : vector<8x128xf32> to vector<8x32xf32>
    %317 = vector.extract_strided_slice %315 {offsets = [0, 32], sizes = [8, 32], strides = [1, 1]} : vector<8x128xf32> to vector<8x32xf32>
    %318 = vector.extract_strided_slice %315 {offsets = [0, 64], sizes = [8, 32], strides = [1, 1]} : vector<8x128xf32> to vector<8x32xf32>
    %319 = vector.extract_strided_slice %315 {offsets = [0, 96], sizes = [8, 32], strides = [1, 1]} : vector<8x128xf32> to vector<8x32xf32>
    %320 = arith.mulf %317, %278 : vector<8x32xf32>
    %321 = arith.mulf %316, %318 : vector<8x32xf32>
    %322 = arith.addf %320, %321 : vector<8x32xf32>
    %323 = math.tanh %322 : vector<8x32xf32>
    %324 = arith.mulf %319, %323 : vector<8x32xf32>
    %325 = arith.index_cast %c6_i32 : i32 to index
    %c0_102 = arith.constant 0 : index
    %c0_103 = arith.constant 0 : index
    %326 = vector.load %arg16[%325, %c0_102, %c0_103] : memref<8x8x128xf32, #tpu.memory_space<vmem>>, vector<1x8x128xf32>
    %327 = vector.shape_cast %326 : vector<1x8x128xf32> to vector<8x128xf32>
    %cst_104 = arith.constant dense<0.000000e+00> : vector<8x128xf32>
    %328 = tpu.matmul %298, %22, %cst_104 {dimension_numbers = #tpu.dot_dimension_numbers<[1], [0], [0], [1], [0, 0, 1, 1], [], []>} : vector<8x32xf32>, vector<32x128xf32>, vector<8x128xf32> -> vector<8x128xf32>
    %329 = arith.addf %327, %328 : vector<8x128xf32>
    %330 = arith.mulf %329, %31 : vector<8x128xf32>
    %331 = math.tanh %330 : vector<8x128xf32>
    %332 = arith.mulf %331, %31 : vector<8x128xf32>
    %333 = arith.addf %332, %34 : vector<8x128xf32>
    %334 = vector.extract_strided_slice %333 {offsets = [0, 0], sizes = [8, 32], strides = [1, 1]} : vector<8x128xf32> to vector<8x32xf32>
    %335 = vector.extract_strided_slice %333 {offsets = [0, 32], sizes = [8, 32], strides = [1, 1]} : vector<8x128xf32> to vector<8x32xf32>
    %336 = vector.extract_strided_slice %333 {offsets = [0, 64], sizes = [8, 32], strides = [1, 1]} : vector<8x128xf32> to vector<8x32xf32>
    %337 = vector.extract_strided_slice %333 {offsets = [0, 96], sizes = [8, 32], strides = [1, 1]} : vector<8x128xf32> to vector<8x32xf32>
    %338 = arith.mulf %335, %296 : vector<8x32xf32>
    %339 = arith.mulf %334, %336 : vector<8x32xf32>
    %340 = arith.addf %338, %339 : vector<8x32xf32>
    %341 = math.tanh %340 : vector<8x32xf32>
    %342 = arith.mulf %337, %341 : vector<8x32xf32>
    %343 = arith.index_cast %c6_i32 : i32 to index
    %c0_105 = arith.constant 0 : index
    %c0_106 = arith.constant 0 : index
    %344 = vector.load %arg17[%343, %c0_105, %c0_106] : memref<8x8x32xf32, #tpu.memory_space<vmem>>, vector<1x8x32xf32>
    %345 = vector.shape_cast %344 : vector<1x8x32xf32> to vector<8x32xf32>
    %346 = vector.shape_cast %324 : vector<8x32xf32> to vector<1x8x32xf32>
    tpu.vector_store %arg17[%343, %c0_105, %c0_106], %346 {strides = array<i32>} : memref<8x8x32xf32, #tpu.memory_space<vmem>>, vector<1x8x32xf32>,
    %347 = arith.index_cast %c6_i32 : i32 to index
    %c0_107 = arith.constant 0 : index
    %c0_108 = arith.constant 0 : index
    %348 = vector.load %arg18[%347, %c0_107, %c0_108] : memref<8x8x32xf32, #tpu.memory_space<vmem>>, vector<1x8x32xf32>
    %349 = vector.shape_cast %348 : vector<1x8x32xf32> to vector<8x32xf32>
    %350 = vector.shape_cast %342 : vector<8x32xf32> to vector<1x8x32xf32>
    tpu.vector_store %arg18[%347, %c0_107, %c0_108], %350 {strides = array<i32>} : memref<8x8x32xf32, #tpu.memory_space<vmem>>, vector<1x8x32xf32>,
    %c7_i32 = arith.constant 7 : i32
    %351 = arith.index_cast %c7_i32 : i32 to index
    %c0_109 = arith.constant 0 : index
    %c0_110 = arith.constant 0 : index
    %352 = vector.load %arg15[%351, %c0_109, %c0_110] : memref<8x8x128xf32, #tpu.memory_space<vmem>>, vector<1x8x128xf32>
    %353 = vector.shape_cast %352 : vector<1x8x128xf32> to vector<8x128xf32>
    %cst_111 = arith.constant dense<0.000000e+00> : vector<8x128xf32>
    %354 = tpu.matmul %324, %21, %cst_111 {dimension_numbers = #tpu.dot_dimension_numbers<[1], [0], [0], [1], [0, 0, 1, 1], [], []>} : vector<8x32xf32>, vector<32x128xf32>, vector<8x128xf32> -> vector<8x128xf32>
    %355 = arith.addf %353, %354 : vector<8x128xf32>
    %356 = arith.mulf %355, %31 : vector<8x128xf32>
    %357 = math.tanh %356 : vector<8x128xf32>
    %358 = arith.mulf %357, %31 : vector<8x128xf32>
    %359 = arith.addf %358, %34 : vector<8x128xf32>
    %360 = vector.extract_strided_slice %359 {offsets = [0, 0], sizes = [8, 32], strides = [1, 1]} : vector<8x128xf32> to vector<8x32xf32>
    %361 = vector.extract_strided_slice %359 {offsets = [0, 32], sizes = [8, 32], strides = [1, 1]} : vector<8x128xf32> to vector<8x32xf32>
    %362 = vector.extract_strided_slice %359 {offsets = [0, 64], sizes = [8, 32], strides = [1, 1]} : vector<8x128xf32> to vector<8x32xf32>
    %363 = vector.extract_strided_slice %359 {offsets = [0, 96], sizes = [8, 32], strides = [1, 1]} : vector<8x128xf32> to vector<8x32xf32>
    %364 = arith.mulf %361, %322 : vector<8x32xf32>
    %365 = arith.mulf %360, %362 : vector<8x32xf32>
    %366 = arith.addf %364, %365 : vector<8x32xf32>
    %367 = math.tanh %366 : vector<8x32xf32>
    %368 = arith.mulf %363, %367 : vector<8x32xf32>
    %369 = arith.index_cast %c7_i32 : i32 to index
    %c0_112 = arith.constant 0 : index
    %c0_113 = arith.constant 0 : index
    %370 = vector.load %arg16[%369, %c0_112, %c0_113] : memref<8x8x128xf32, #tpu.memory_space<vmem>>, vector<1x8x128xf32>
    %371 = vector.shape_cast %370 : vector<1x8x128xf32> to vector<8x128xf32>
    %cst_114 = arith.constant dense<0.000000e+00> : vector<8x128xf32>
    %372 = tpu.matmul %342, %22, %cst_114 {dimension_numbers = #tpu.dot_dimension_numbers<[1], [0], [0], [1], [0, 0, 1, 1], [], []>} : vector<8x32xf32>, vector<32x128xf32>, vector<8x128xf32> -> vector<8x128xf32>
    %373 = arith.addf %371, %372 : vector<8x128xf32>
    %374 = arith.mulf %373, %31 : vector<8x128xf32>
    %375 = math.tanh %374 : vector<8x128xf32>
    %376 = arith.mulf %375, %31 : vector<8x128xf32>
    %377 = arith.addf %376, %34 : vector<8x128xf32>
    %378 = vector.extract_strided_slice %377 {offsets = [0, 0], sizes = [8, 32], strides = [1, 1]} : vector<8x128xf32> to vector<8x32xf32>
    %379 = vector.extract_strided_slice %377 {offsets = [0, 32], sizes = [8, 32], strides = [1, 1]} : vector<8x128xf32> to vector<8x32xf32>
    %380 = vector.extract_strided_slice %377 {offsets = [0, 64], sizes = [8, 32], strides = [1, 1]} : vector<8x128xf32> to vector<8x32xf32>
    %381 = vector.extract_strided_slice %377 {offsets = [0, 96], sizes = [8, 32], strides = [1, 1]} : vector<8x128xf32> to vector<8x32xf32>
    %382 = arith.mulf %379, %340 : vector<8x32xf32>
    %383 = arith.mulf %378, %380 : vector<8x32xf32>
    %384 = arith.addf %382, %383 : vector<8x32xf32>
    %385 = math.tanh %384 : vector<8x32xf32>
    %386 = arith.mulf %381, %385 : vector<8x32xf32>
    %387 = arith.index_cast %c7_i32 : i32 to index
    %c0_115 = arith.constant 0 : index
    %c0_116 = arith.constant 0 : index
    %388 = vector.load %arg17[%387, %c0_115, %c0_116] : memref<8x8x32xf32, #tpu.memory_space<vmem>>, vector<1x8x32xf32>
    %389 = vector.shape_cast %388 : vector<1x8x32xf32> to vector<8x32xf32>
    %390 = vector.shape_cast %368 : vector<8x32xf32> to vector<1x8x32xf32>
    tpu.vector_store %arg17[%387, %c0_115, %c0_116], %390 {strides = array<i32>} : memref<8x8x32xf32, #tpu.memory_space<vmem>>, vector<1x8x32xf32>,
    %391 = arith.index_cast %c7_i32 : i32 to index
    %c0_117 = arith.constant 0 : index
    %c0_118 = arith.constant 0 : index
    %392 = vector.load %arg18[%391, %c0_117, %c0_118] : memref<8x8x32xf32, #tpu.memory_space<vmem>>, vector<1x8x32xf32>
    %393 = vector.shape_cast %392 : vector<1x8x32xf32> to vector<8x32xf32>
    %394 = vector.shape_cast %386 : vector<8x32xf32> to vector<1x8x32xf32>
    tpu.vector_store %arg18[%391, %c0_117, %c0_118], %394 {strides = array<i32>} : memref<8x8x32xf32, #tpu.memory_space<vmem>>, vector<1x8x32xf32>,
    %c8_i32 = arith.constant 8 : i32
    %c0_119 = arith.constant 0 : index
    %c0_120 = arith.constant 0 : index
    %c0_121 = arith.constant 0 : index
    %395 = vector.load %arg14[%c0_119, %c0_120, %c0_121] : memref<4x8x32xf32, #tpu.memory_space<vmem>>, vector<1x8x32xf32>
    %396 = vector.shape_cast %395 : vector<1x8x32xf32> to vector<8x32xf32>
    %397 = vector.shape_cast %368 : vector<8x32xf32> to vector<1x8x32xf32>
    tpu.vector_store %arg14[%c0_119, %c0_120, %c0_121], %397 {strides = array<i32>} : memref<4x8x32xf32, #tpu.memory_space<vmem>>, vector<1x8x32xf32>,
    %c1_122 = arith.constant 1 : index
    %c0_123 = arith.constant 0 : index
    %c0_124 = arith.constant 0 : index
    %398 = vector.load %arg14[%c1_122, %c0_123, %c0_124] : memref<4x8x32xf32, #tpu.memory_space<vmem>>, vector<1x8x32xf32>
    %399 = vector.shape_cast %398 : vector<1x8x32xf32> to vector<8x32xf32>
    %400 = vector.shape_cast %366 : vector<8x32xf32> to vector<1x8x32xf32>
    tpu.vector_store %arg14[%c1_122, %c0_123, %c0_124], %400 {strides = array<i32>} : memref<4x8x32xf32, #tpu.memory_space<vmem>>, vector<1x8x32xf32>,
    %c2_125 = arith.constant 2 : index
    %c0_126 = arith.constant 0 : index
    %c0_127 = arith.constant 0 : index
    %401 = vector.load %arg14[%c2_125, %c0_126, %c0_127] : memref<4x8x32xf32, #tpu.memory_space<vmem>>, vector<1x8x32xf32>
    %402 = vector.shape_cast %401 : vector<1x8x32xf32> to vector<8x32xf32>
    %403 = vector.shape_cast %386 : vector<8x32xf32> to vector<1x8x32xf32>
    tpu.vector_store %arg14[%c2_125, %c0_126, %c0_127], %403 {strides = array<i32>} : memref<4x8x32xf32, #tpu.memory_space<vmem>>, vector<1x8x32xf32>,
    %c3_128 = arith.constant 3 : index
    %c0_129 = arith.constant 0 : index
    %c0_130 = arith.constant 0 : index
    %404 = vector.load %arg14[%c3_128, %c0_129, %c0_130] : memref<4x8x32xf32, #tpu.memory_space<vmem>>, vector<1x8x32xf32>
    %405 = vector.shape_cast %404 : vector<1x8x32xf32> to vector<8x32xf32>
    %406 = vector.shape_cast %384 : vector<8x32xf32> to vector<1x8x32xf32>
    tpu.vector_store %arg14[%c3_128, %c0_129, %c0_130], %406 {strides = array<i32>} : memref<4x8x32xf32, #tpu.memory_space<vmem>>, vector<1x8x32xf32>,
    %c0_131 = arith.constant 0 : index
    %c0_132 = arith.constant 0 : index
    %c0_133 = arith.constant 0 : index
    %407 = vector.load %arg17[%c0_131, %c0_132, %c0_133] : memref<8x8x32xf32, #tpu.memory_space<vmem>>, vector<8x8x32xf32>
    %408 = vector.shape_cast %407 : vector<8x8x32xf32> to vector<64x32xf32>
    %c0_134 = arith.constant 0 : index
    %c0_135 = arith.constant 0 : index
    %c0_136 = arith.constant 0 : index
    %409 = vector.load %arg18[%c0_134, %c0_135, %c0_136] : memref<8x8x32xf32, #tpu.memory_space<vmem>>, vector<8x8x32xf32>
    %410 = vector.shape_cast %409 : vector<8x8x32xf32> to vector<64x32xf32>
    %c0_137 = arith.constant 0 : index
    %c0_138 = arith.constant 0 : index
    %411 = vector.load %arg9[%c0_137, %c0_138] : memref<32x128xf32, #tpu.memory_space<vmem>>, vector<32x128xf32>
    %cst_139 = arith.constant dense<0.000000e+00> : vector<64x128xf32>
    %412 = tpu.matmul %408, %411, %cst_139 {dimension_numbers = #tpu.dot_dimension_numbers<[1], [0], [0], [1], [0, 0, 1, 1], [], []>} : vector<64x32xf32>, vector<32x128xf32>, vector<64x128xf32> -> vector<64x128xf32>
    %c0_140 = arith.constant 0 : index
    %c0_141 = arith.constant 0 : index
    %413 = vector.load %arg11[%c0_140, %c0_141] : memref<1x128xf32, #tpu.memory_space<vmem>>, vector<1x128xf32>
    %414 = vector.broadcast %413 : vector<1x128xf32> to vector<64x128xf32>
    %415 = arith.addf %412, %414 : vector<64x128xf32>
    %416 = vector.shape_cast %415 : vector<64x128xf32> to vector<8x8x128xf32>
    %c0_142 = arith.constant 0 : index
    %c0_143 = arith.constant 0 : index
    %c0_144 = arith.constant 0 : index
    %417 = vector.load %arg12[%c0_142, %c0_143, %c0_144] : memref<8x8x128xf32, #tpu.memory_space<vmem>>, vector<8x8x128xf32>
    tpu.vector_store %arg12[%c0_142, %c0_143, %c0_144], %416 {strides = array<i32>} : memref<8x8x128xf32, #tpu.memory_space<vmem>>, vector<8x8x128xf32>,
    %c0_145 = arith.constant 0 : index
    %c0_146 = arith.constant 0 : index
    %418 = vector.load %arg10[%c0_145, %c0_146] : memref<32x128xf32, #tpu.memory_space<vmem>>, vector<32x128xf32>
    %cst_147 = arith.constant dense<0.000000e+00> : vector<64x128xf32>
    %419 = tpu.matmul %410, %418, %cst_147 {dimension_numbers = #tpu.dot_dimension_numbers<[1], [0], [0], [1], [0, 0, 1, 1], [], []>} : vector<64x32xf32>, vector<32x128xf32>, vector<64x128xf32> -> vector<64x128xf32>
    %420 = vector.shape_cast %419 : vector<64x128xf32> to vector<8x8x128xf32>
    %c0_148 = arith.constant 0 : index
    %c0_149 = arith.constant 0 : index
    %c0_150 = arith.constant 0 : index
    %421 = vector.load %arg13[%c0_148, %c0_149, %c0_150] : memref<8x8x128xf32, #tpu.memory_space<vmem>>, vector<8x8x128xf32>
    tpu.vector_store %arg13[%c0_148, %c0_149, %c0_150], %420 {strides = array<i32>} : memref<8x8x128xf32, #tpu.memory_space<vmem>>, vector<8x8x128xf32>,
    return
  }
  func.func @transform_0(%arg0: i32) -> (i32, i32, i32) {
    %c0_i32 = arith.constant 0 : i32
    %c0_i32_0 = arith.constant 0 : i32
    %c0_i32_1 = arith.constant 0 : i32
    return %arg0, %c0_i32, %c0_i32_0 : i32, i32, i32
  }
  func.func @transform_1(%arg0: i32) -> (i32, i32, i32) {
    %c0_i32 = arith.constant 0 : i32
    %c0_i32_0 = arith.constant 0 : i32
    %c0_i32_1 = arith.constant 0 : i32
    return %arg0, %c0_i32, %c0_i32_0 : i32, i32, i32
  }
  func.func @transform_2(%arg0: i32) -> (i32, i32) {
    %c0_i32 = arith.constant 0 : i32
    %c0_i32_0 = arith.constant 0 : i32
    %c0_i32_1 = arith.constant 0 : i32
    return %c0_i32, %c0_i32_0 : i32, i32
  }
  func.func @transform_3(%arg0: i32) -> (i32, i32) {
    %c0_i32 = arith.constant 0 : i32
    %c0_i32_0 = arith.constant 0 : i32
    %c0_i32_1 = arith.constant 0 : i32
    return %c0_i32, %c0_i32_0 : i32, i32
  }
  func.func @transform_4(%arg0: i32) -> (i32, i32) {
    %c0_i32 = arith.constant 0 : i32
    %c0_i32_0 = arith.constant 0 : i32
    %c0_i32_1 = arith.constant 0 : i32
    return %c0_i32, %c0_i32_0 : i32, i32
  }
  func.func @transform_5(%arg0: i32) -> (i32, i32) {
    %c0_i32 = arith.constant 0 : i32
    %c0_i32_0 = arith.constant 0 : i32
    %c0_i32_1 = arith.constant 0 : i32
    return %c0_i32, %c0_i32_0 : i32, i32
  }
  func.func @transform_6(%arg0: i32) -> (i32, i32) {
    %c0_i32 = arith.constant 0 : i32
    %c0_i32_0 = arith.constant 0 : i32
    %c0_i32_1 = arith.constant 0 : i32
    return %c0_i32, %c0_i32_0 : i32, i32
  }
  func.func @transform_7(%arg0: i32) -> (i32, i32) {
    %c0_i32 = arith.constant 0 : i32
    %c0_i32_0 = arith.constant 0 : i32
    %c0_i32_1 = arith.constant 0 : i32
    return %c0_i32, %c0_i32_0 : i32, i32
  }
  func.func @transform_8(%arg0: i32) -> (i32, i32) {
    %c0_i32 = arith.constant 0 : i32
    %c0_i32_0 = arith.constant 0 : i32
    %c0_i32_1 = arith.constant 0 : i32
    return %c0_i32, %c0_i32_0 : i32, i32
  }
  func.func @transform_9(%arg0: i32) -> (i32, i32) {
    %c0_i32 = arith.constant 0 : i32
    %c0_i32_0 = arith.constant 0 : i32
    %c0_i32_1 = arith.constant 0 : i32
    return %c0_i32, %c0_i32_0 : i32, i32
  }
  func.func @transform_10(%arg0: i32) -> (i32, i32) {
    %c0_i32 = arith.constant 0 : i32
    %c0_i32_0 = arith.constant 0 : i32
    %c0_i32_1 = arith.constant 0 : i32
    return %c0_i32, %c0_i32_0 : i32, i32
  }
  func.func @transform_11(%arg0: i32) -> (i32, i32, i32) {
    %c0_i32 = arith.constant 0 : i32
    %c0_i32_0 = arith.constant 0 : i32
    %c0_i32_1 = arith.constant 0 : i32
    return %arg0, %c0_i32, %c0_i32_0 : i32, i32, i32
  }
  func.func @transform_12(%arg0: i32) -> (i32, i32, i32) {
    %c0_i32 = arith.constant 0 : i32
    %c0_i32_0 = arith.constant 0 : i32
    %c0_i32_1 = arith.constant 0 : i32
    return %arg0, %c0_i32, %c0_i32_0 : i32, i32, i32
  }
}

</mosaic_0001>

<llo_original>
// kernel: bidirectional_lstm_forward.1
$region0: #{bidirectional_lstm_forward.1}
  #allocation0 [shape = 'u32[]', space=smem, size = 0x4, offset = 0x4, fixed_abs, tag = 'smem constant byte address 0x4 - core index']
  #allocation1 [shape = 'u32[72,128]{1,0:T(1,128)}', space=vmem, size = 0x9000, scoped, tag = 'internal scratch']
  #allocation2 [shape = 'f32[4,8,32]{2,1,0:T(8,128)}', space=vmem, size = 0x4000, scoped, tag = 'scratch operand']
  #allocation3 [shape = 'f32[8,8,128]{2,1,0:T(8,128)}', space=vmem, size = 0x8000, scoped, tag = 'scratch operand']
  #allocation4 [shape = 'f32[8,8,128]{2,1,0:T(8,128)}', space=vmem, size = 0x8000, scoped, tag = 'scratch operand']
  #allocation5 [shape = 'f32[8,8,32]{2,1,0:T(8,128)}', space=vmem, size = 0x8000, scoped, tag = 'scratch operand']
  #allocation6 [shape = 'f32[8,8,32]{2,1,0:T(8,128)}', space=vmem, size = 0x8000, scoped, tag = 'scratch operand']
  %s0 = inlined_call_operand.vmem [shape: f32[8,8,16], index: 0, kind: input, shape index: {}]
  %s1 = inlined_call_operand.vmem [shape: f32[8,8,16], index: 1, kind: input, shape index: {}]
  %s2 = inlined_call_operand.vmem [shape: f32[16,128], index: 2, kind: input, shape index: {}]
  %s3 = inlined_call_operand.vmem [shape: f32[16,128], index: 3, kind: input, shape index: {}]
  %s4 = inlined_call_operand.vmem [shape: f32[1,128], index: 4, kind: input, shape index: {}]
  %s5 = inlined_call_operand.vmem [shape: f32[1,128], index: 5, kind: input, shape index: {}]
  %s6 = inlined_call_operand.vmem [shape: f32[32,128], index: 6, kind: input, shape index: {}]
  %s7 = inlined_call_operand.vmem [shape: f32[32,128], index: 7, kind: input, shape index: {}]
  %s8 = inlined_call_operand.vmem [shape: f32[32,128], index: 8, kind: input, shape index: {}]
  %s9 = inlined_call_operand.vmem [shape: f32[32,128], index: 9, kind: input, shape index: {}]
  %s10 = inlined_call_operand.vmem [shape: f32[1,128], index: 10, kind: input, shape index: {}]
  %s11 = inlined_call_operand.vmem [shape: f32[8,8,128], index: 11, kind: output, shape index: {0}]
  %s12 = inlined_call_operand.vmem [shape: f32[8,8,128], index: 12, kind: output, shape index: {1}]
  %13 = xla_tuple %s11, %s12
  %s14 = sld [smem:[#allocation0]]
  $region66: #{bidirectional_lstm_forward.1} parent=0
    _
  %s16 = ssub.s32 1, %s14
  %s17 = scalar_select 0, %s16, %s14
  // Predicated region
  $region2: #{bidirectional_lstm_forward.1} parent=0 // pred_check
    _
  $region3: #{bidirectional_lstm_forward.1} parent=0 // pred_check_branch
    %19 = sbr.rel (0) target = $region5
  $region4: #{bidirectional_lstm_forward.1} parent=0 // pred_region
    _
  $region5: #{bidirectional_lstm_forward.1} parent=0 // pred_fallthru
    _
  // Predicated region
  $region6: #{bidirectional_lstm_forward.1} parent=0 // pred_check
    _
  $region7: #{bidirectional_lstm_forward.1} parent=0 // pred_check_branch
    %21 = sbr.rel (0) target = $region9
  $region8: #{bidirectional_lstm_forward.1} parent=0 // pred_region
    _
  $region9: #{bidirectional_lstm_forward.1} parent=0 // pred_fallthru
    _
  // Predicated region
  $region10: #{bidirectional_lstm_forward.1} parent=0 // pred_check
    _
  $region11: #{bidirectional_lstm_forward.1} parent=0 // pred_check_branch
    %23 = sbr.rel (0) target = $region13
  $region12: #{bidirectional_lstm_forward.1} parent=0 // pred_region
    _
  $region13: #{bidirectional_lstm_forward.1} parent=0 // pred_fallthru
    _
  // Predicated region
  $region14: #{bidirectional_lstm_forward.1} parent=0 // pred_check
    _
  $region15: #{bidirectional_lstm_forward.1} parent=0 // pred_check_branch
    %25 = sbr.rel (0) target = $region17
  $region16: #{bidirectional_lstm_forward.1} parent=0 // pred_region
    _
  $region17: #{bidirectional_lstm_forward.1} parent=0 // pred_fallthru
    _
  // Predicated region
  $region18: #{bidirectional_lstm_forward.1} parent=0 // pred_check
    _
  $region19: #{bidirectional_lstm_forward.1} parent=0 // pred_check_branch
    %27 = sbr.rel (0) target = $region21
  $region20: #{bidirectional_lstm_forward.1} parent=0 // pred_region
    _
  $region21: #{bidirectional_lstm_forward.1} parent=0 // pred_fallthru
    _
  // Predicated region
  $region22: #{bidirectional_lstm_forward.1} parent=0 // pred_check
    _
  $region23: #{bidirectional_lstm_forward.1} parent=0 // pred_check_branch
    %29 = sbr.rel (0) target = $region25
  $region24: #{bidirectional_lstm_forward.1} parent=0 // pred_region
    _
  $region25: #{bidirectional_lstm_forward.1} parent=0 // pred_fallthru
    _
  // Predicated region
  $region26: #{bidirectional_lstm_forward.1} parent=0 // pred_check
    _
  $region27: #{bidirectional_lstm_forward.1} parent=0 // pred_check_branch
    %31 = sbr.rel (0) target = $region29
  $region28: #{bidirectional_lstm_forward.1} parent=0 // pred_region
    _
  $region29: #{bidirectional_lstm_forward.1} parent=0 // pred_fallthru
    _
  // Predicated region
  $region30: #{bidirectional_lstm_forward.1} parent=0 // pred_check
    _
  $region31: #{bidirectional_lstm_forward.1} parent=0 // pred_check_branch
    %33 = sbr.rel (0) target = $region33
  $region32: #{bidirectional_lstm_forward.1} parent=0 // pred_region
    _
  $region33: #{bidirectional_lstm_forward.1} parent=0 // pred_fallthru
    _
  // Predicated region
  $region34: #{bidirectional_lstm_forward.1} parent=0 // pred_check
    _
  $region35: #{bidirectional_lstm_forward.1} parent=0 // pred_check_branch
    %35 = sbr.rel (0) target = $region37
  $region36: #{bidirectional_lstm_forward.1} parent=0 // pred_region
    _
  $region37: #{bidirectional_lstm_forward.1} parent=0 // pred_fallthru
    _
  // Predicated region
  $region38: #{bidirectional_lstm_forward.1} parent=0 // pred_check
    _
  $region39: #{bidirectional_lstm_forward.1} parent=0 // pred_check_branch
    %37 = sbr.rel (0) target = $region41
  $region40: #{bidirectional_lstm_forward.1} parent=0 // pred_region
    _
  $region41: #{bidirectional_lstm_forward.1} parent=0 // pred_fallthru
    _
  // Predicated region
  $region42: #{bidirectional_lstm_forward.1} parent=0 // pred_check
    _
  $region43: #{bidirectional_lstm_forward.1} parent=0 // pred_check_branch
    %39 = sbr.rel (0) target = $region45
  $region44: #{bidirectional_lstm_forward.1} parent=0 // pred_region
    _
  $region45: #{bidirectional_lstm_forward.1} parent=0 // pred_fallthru
    _
  %p40 = scmp.eq.s32.totalorder 0, 0
  // Predicated region
  $region46: #{bidirectional_lstm_forward.1} parent=0 // pred_check
    %p41 = pneg %p40
  $region47: #{bidirectional_lstm_forward.1} parent=0 // pred_check_branch
    %43 = sbr.rel (%p41) target = $region49
  $region48: #{bidirectional_lstm_forward.1} parent=0 // pred_region
    %vm44 = vcmask 261120
    %45 = vst.msk [vmem:[#allocation2] sm:$0xff] %vm44, 0.0
    %46 = vst.msk [vmem:[#allocation2 + $0x8] sm:$0xff] %vm44, 0.0
    %47 = vst.msk [vmem:[#allocation2 + $0x10] sm:$0xff] %vm44, 0.0
    %48 = vst.msk [vmem:[#allocation2 + $0x18] sm:$0xff] %vm44, 0.0
  $region49: #{bidirectional_lstm_forward.1} parent=0 // pred_fallthru
    _
  %v49 = vld [vmem:[%s0] sm:$0xff]
  %v50 = vld [vmem:[%s0 + $0x8] sm:$0xff]
  %v51 = vld [vmem:[%s0 + $0x10] sm:$0xff]
  %v52 = vld [vmem:[%s0 + $0x18] sm:$0xff]
  %v53 = vld [vmem:[%s0 + $0x20] sm:$0xff]
  %v54 = vld [vmem:[%s0 + $0x28] sm:$0xff]
  %v55 = vld [vmem:[%s0 + $0x30] sm:$0xff]
  %v56 = vld [vmem:[%s0 + $0x38] sm:$0xff]
  %v57 = vld [vmem:[%s1] sm:$0xff]
  %v58 = vld [vmem:[%s1 + $0x8] sm:$0xff]
  %v59 = vld [vmem:[%s1 + $0x10] sm:$0xff]
  %v60 = vld [vmem:[%s1 + $0x18] sm:$0xff]
  %v61 = vld [vmem:[%s1 + $0x20] sm:$0xff]
  %v62 = vld [vmem:[%s1 + $0x28] sm:$0xff]
  %v63 = vld [vmem:[%s1 + $0x30] sm:$0xff]
  %v64 = vld [vmem:[%s1 + $0x38] sm:$0xff]
  %v65 = vld [vmem:[%s2] sm:$0xff]
  %v66 = vld [vmem:[%s2 + $0x8] sm:$0xff]
  %v67 = vld [vmem:[%s4] sm:$0x1]
  %v69 = vperm.slane %v67, 0
  %vm71 = vcmask 130048
  %v73 = vsel %vm71, %v49, 0
  %v76 = vsel %vm71, %v50, 0
  %v79 = vsel %vm71, %v51, 0
  %v82 = vsel %vm71, %v52, 0
  %v85 = vsel %vm71, %v53, 0
  %v88 = vsel %vm71, %v54, 0
  %v91 = vsel %vm71, %v55, 0
  %v94 = vsel %vm71, %v56, 0
  %96 = vmatpush.msra.mxu0 0.0
  %97 = vmatpush.msra.mxu0 0.0
  %98 = vmatpush.msra.mxu0 0.0
  %99 = vmatpush.msra.mxu0 0.0
  %100 = vmatpush.msra.mxu0 0.0
  %101 = vmatpush.msra.mxu0 0.0
  %102 = vmatpush.msra.mxu0 0.0
  %103 = vmatpush.msra.mxu0 0.0
  %104 = vmatpush.msra.mxu0 0.0
  %105 = vmatpush.msra.mxu0 0.0
  %106 = vmatpush.msra.mxu0 0.0
  %107 = vmatpush.msra.mxu0 0.0
  %108 = vmatpush.msra.mxu0 0.0
  %109 = vmatpush.msra.mxu0 0.0
  %110 = vmatpush.msra.mxu0 %v66
  %111 = vmatpush.msra.mxu0 %v65
  %112 = vmatmul.f32.gmra.mxu0 %v73
  %v113 = vpop.f32.mrf.mxu0
  %v114 = vadd.f32 %v69, %v113
  %115 = vmatmul.f32.gmra.mxu0 %v76
  %v116 = vpop.f32.mrf.mxu0
  %v117 = vadd.f32 %v69, %v116
  %118 = vmatmul.f32.gmra.mxu0 %v79
  %v119 = vpop.f32.mrf.mxu0
  %v120 = vadd.f32 %v69, %v119
  %121 = vmatmul.f32.gmra.mxu0 %v82
  %v122 = vpop.f32.mrf.mxu0
  %v123 = vadd.f32 %v69, %v122
  %124 = vmatmul.f32.gmra.mxu0 %v85
  %v125 = vpop.f32.mrf.mxu0
  %v126 = vadd.f32 %v69, %v125
  %127 = vmatmul.f32.gmra.mxu0 %v88
  %v128 = vpop.f32.mrf.mxu0
  %v129 = vadd.f32 %v69, %v128
  %130 = vmatmul.f32.gmra.mxu0 %v91
  %v131 = vpop.f32.mrf.mxu0
  %v132 = vadd.f32 %v69, %v131
  %133 = vmatmul.f32.gmra.mxu0 %v94
  %v134 = vpop.f32.mrf.mxu0
  %v135 = vadd.f32 %v69, %v134
  %136 = vdwg.mxu0
  %137 = vst [vmem:[#allocation3] sm:$0xff] %v114
  %138 = vst [vmem:[#allocation3 + $0x8] sm:$0xff] %v117
  %139 = vst [vmem:[#allocation3 + $0x10] sm:$0xff] %v120
  %140 = vst [vmem:[#allocation3 + $0x18] sm:$0xff] %v123
  %141 = vst [vmem:[#allocation3 + $0x20] sm:$0xff] %v126
  %142 = vst [vmem:[#allocation3 + $0x28] sm:$0xff] %v129
  %143 = vst [vmem:[#allocation3 + $0x30] sm:$0xff] %v132
  %144 = vst [vmem:[#allocation3 + $0x38] sm:$0xff] %v135
  %v145 = vld [vmem:[%s3] sm:$0xff]
  %v146 = vld [vmem:[%s3 + $0x8] sm:$0xff]
  %v147 = vld [vmem:[%s5] sm:$0x1]
  %v149 = vperm.slane %v147, 0
  %v152 = vsel %vm71, %v57, 0
  %v155 = vsel %vm71, %v58, 0
  %v158 = vsel %vm71, %v59, 0
  %v161 = vsel %vm71, %v60, 0
  %v164 = vsel %vm71, %v61, 0
  %v167 = vsel %vm71, %v62, 0
  %v170 = vsel %vm71, %v63, 0
  %v173 = vsel %vm71, %v64, 0
  %175 = vmatpush.msra.mxu0 0.0
  %176 = vmatpush.msra.mxu0 0.0
  %177 = vmatpush.msra.mxu0 0.0
  %178 = vmatpush.msra.mxu0 0.0
  %179 = vmatpush.msra.mxu0 0.0
  %180 = vmatpush.msra.mxu0 0.0
  %181 = vmatpush.msra.mxu0 0.0
  %182 = vmatpush.msra.mxu0 0.0
  %183 = vmatpush.msra.mxu0 0.0
  %184 = vmatpush.msra.mxu0 0.0
  %185 = vmatpush.msra.mxu0 0.0
  %186 = vmatpush.msra.mxu0 0.0
  %187 = vmatpush.msra.mxu0 0.0
  %188 = vmatpush.msra.mxu0 0.0
  %189 = vmatpush.msra.mxu0 %v146
  %190 = vmatpush.msra.mxu0 %v145
  %191 = vmatmul.f32.gmra.mxu0 %v152
  %v192 = vpop.f32.mrf.mxu0
  %v193 = vadd.f32 %v149, %v192
  %194 = vmatmul.f32.gmra.mxu0 %v155
  %v195 = vpop.f32.mrf.mxu0
  %v196 = vadd.f32 %v149, %v195
  %197 = vmatmul.f32.gmra.mxu0 %v158
  %v198 = vpop.f32.mrf.mxu0
  %v199 = vadd.f32 %v149, %v198
  %200 = vmatmul.f32.gmra.mxu0 %v161
  %v201 = vpop.f32.mrf.mxu0
  %v202 = vadd.f32 %v149, %v201
  %203 = vmatmul.f32.gmra.mxu0 %v164
  %v204 = vpop.f32.mrf.mxu0
  %v205 = vadd.f32 %v149, %v204
  %206 = vmatmul.f32.gmra.mxu0 %v167
  %v207 = vpop.f32.mrf.mxu0
  %v208 = vadd.f32 %v149, %v207
  %209 = vmatmul.f32.gmra.mxu0 %v170
  %v210 = vpop.f32.mrf.mxu0
  %v211 = vadd.f32 %v149, %v210
  %212 = vmatmul.f32.gmra.mxu0 %v173
  %v213 = vpop.f32.mrf.mxu0
  %v214 = vadd.f32 %v149, %v213
  %215 = vdwg.mxu0
  %216 = vst [vmem:[#allocation4] sm:$0xff] %v193
  %217 = vst [vmem:[#allocation4 + $0x8] sm:$0xff] %v196
  %218 = vst [vmem:[#allocation4 + $0x10] sm:$0xff] %v199
  %219 = vst [vmem:[#allocation4 + $0x18] sm:$0xff] %v202
  %220 = vst [vmem:[#allocation4 + $0x20] sm:$0xff] %v205
  %221 = vst [vmem:[#allocation4 + $0x28] sm:$0xff] %v208
  %222 = vst [vmem:[#allocation4 + $0x30] sm:$0xff] %v211
  %223 = vst [vmem:[#allocation4 + $0x38] sm:$0xff] %v214
  %v224 = vld [vmem:[%s6] sm:$0xff]
  %v225 = vld [vmem:[%s6 + $0x8] sm:$0xff]
  %v226 = vld [vmem:[%s6 + $0x10] sm:$0xff]
  %v227 = vld [vmem:[%s6 + $0x18] sm:$0xff]
  %v228 = vld [vmem:[%s7] sm:$0xff]
  %v229 = vld [vmem:[%s7 + $0x8] sm:$0xff]
  %v230 = vld [vmem:[%s7 + $0x10] sm:$0xff]
  %v231 = vld [vmem:[%s7 + $0x18] sm:$0xff]
  %v232 = vlaneseq
  %v233 = vand.u32 %v232, 127
  %vm234 = vcmp.ge.s32.totalorder %v233, 64
  %vm235 = vcmp.lt.s32.totalorder %v233, 96
  %vm236 = vmand %vm234, %vm235
  %v237 = vsel %vm236, 1.0, 0.5
  %v238 = vsel %vm236, 0.0, 0.5
  %v239 = vld [vmem:[#allocation2] sm:$0xff]
  %s240 = scalar_lea.vmem [#allocation2], 8
  %v241 = vld [vmem:[%s240] sm:$0xff]
  %s242 = scalar_lea.vmem [#allocation2], 16
  %v243 = vld [vmem:[%s242] sm:$0xff]
  %s244 = scalar_lea.vmem [#allocation2], 24
  %v245 = vld [vmem:[%s244] sm:$0xff]
  %v246 = vld [vmem:[#allocation3] sm:$0xff]
  %vm247 = vcmask 261120
  %v249 = vsel %vm247, %v239, 0
  %251 = vmatpush.msra.mxu0 0.0
  %252 = vmatpush.msra.mxu0 0.0
  %253 = vmatpush.msra.mxu0 0.0
  %254 = vmatpush.msra.mxu0 0.0
  %255 = vmatpush.msra.mxu0 0.0
  %256 = vmatpush.msra.mxu0 0.0
  %257 = vmatpush.msra.mxu0 0.0
  %258 = vmatpush.msra.mxu0 0.0
  %259 = vmatpush.msra.mxu0 0.0
  %260 = vmatpush.msra.mxu0 0.0
  %261 = vmatpush.msra.mxu0 0.0
  %262 = vmatpush.msra.mxu0 0.0
  %263 = vmatpush.msra.mxu0 %v227
  %264 = vmatpush.msra.mxu0 %v226
  %265 = vmatpush.msra.mxu0 %v225
  %266 = vmatpush.msra.mxu0 %v224
  %267 = vmatmul.f32.gmra.mxu0 %v249
  %v268 = vpop.f32.mrf.mxu0
  %v269 = vadd.f32 0.0, %v268
  %270 = vdwg.mxu0
  %v271 = vadd.f32 %v246, %v269
  %v272 = vmul.f32 %v271, %v237
  %v273 = vtanh.pop %v272
  %v274 = vmul.f32 %v273, %v237
  %v275 = vadd.f32 %v274, %v238
  %277 = vrot.lane.b32.xlu0 %v241, 32
  %v278 = vpop.permute.xlu0 %277
  %v280 = vmul.f32 %v275, %v278
  %282 = vrot.lane.b32.xlu0 %v275, 64
  %v283 = vpop.permute.xlu0 %282
  %v285 = vmul.f32 %v275, %v283
  %287 = vrot.lane.b32.xlu0 %v285, 32
  %v288 = vpop.permute.xlu0 %287
  %v290 = vadd.f32 %v280, %v288
  %v291 = vtanh.pop %v290
  %293 = vrot.lane.b32.xlu0 %v291, 64
  %v294 = vpop.permute.xlu0 %293
  %v296 = vmul.f32 %v275, %v294
  %v297 = vld [vmem:[#allocation4] sm:$0xff]
  %v299 = vsel %vm247, %v243, 0
  %301 = vmatpush.msra.mxu0 0.0
  %302 = vmatpush.msra.mxu0 0.0
  %303 = vmatpush.msra.mxu0 0.0
  %304 = vmatpush.msra.mxu0 0.0
  %305 = vmatpush.msra.mxu0 0.0
  %306 = vmatpush.msra.mxu0 0.0
  %307 = vmatpush.msra.mxu0 0.0
  %308 = vmatpush.msra.mxu0 0.0
  %309 = vmatpush.msra.mxu0 0.0
  %310 = vmatpush.msra.mxu0 0.0
  %311 = vmatpush.msra.mxu0 0.0
  %312 = vmatpush.msra.mxu0 0.0
  %313 = vmatpush.msra.mxu0 %v231
  %314 = vmatpush.msra.mxu0 %v230
  %315 = vmatpush.msra.mxu0 %v229
  %316 = vmatpush.msra.mxu0 %v228
  %317 = vmatmul.f32.gmra.mxu0 %v299
  %v318 = vpop.f32.mrf.mxu0
  %v319 = vadd.f32 0.0, %v318
  %320 = vdwg.mxu0
  %v321 = vadd.f32 %v297, %v319
  %v322 = vmul.f32 %v321, %v237
  %v323 = vtanh.pop %v322
  %v324 = vmul.f32 %v323, %v237
  %v325 = vadd.f32 %v324, %v238
  %327 = vrot.lane.b32.xlu0 %v245, 32
  %v328 = vpop.permute.xlu0 %327
  %v330 = vmul.f32 %v325, %v328
  %332 = vrot.lane.b32.xlu0 %v325, 64
  %v333 = vpop.permute.xlu0 %332
  %v335 = vmul.f32 %v325, %v333
  %337 = vrot.lane.b32.xlu0 %v335, 32
  %v338 = vpop.permute.xlu0 %337
  %v340 = vadd.f32 %v330, %v338
  %v341 = vtanh.pop %v340
  %343 = vrot.lane.b32.xlu0 %v341, 64
  %v344 = vpop.permute.xlu0 %343
  %v346 = vmul.f32 %v325, %v344
  %348 = vrot.lane.b32.xlu0 %v296, 32
  %v349 = vpop.permute.xlu0 %348
  %351 = vst.msk [vmem:[#allocation5] sm:$0xff] %vm247, %v349
  %353 = vrot.lane.b32.xlu0 %v346, 32
  %v354 = vpop.permute.xlu0 %353
  %356 = vst.msk [vmem:[#allocation6] sm:$0xff] %vm247, %v354
  %s357 = scalar_lea.vmem [#allocation3], 8
  %v358 = vld [vmem:[%s357] sm:$0xff]
  %v359 = vsel %vm247, %v349, 0
  %361 = vmatpush.msra.mxu0 0.0
  %362 = vmatpush.msra.mxu0 0.0
  %363 = vmatpush.msra.mxu0 0.0
  %364 = vmatpush.msra.mxu0 0.0
  %365 = vmatpush.msra.mxu0 0.0
  %366 = vmatpush.msra.mxu0 0.0
  %367 = vmatpush.msra.mxu0 0.0
  %368 = vmatpush.msra.mxu0 0.0
  %369 = vmatpush.msra.mxu0 0.0
  %370 = vmatpush.msra.mxu0 0.0
  %371 = vmatpush.msra.mxu0 0.0
  %372 = vmatpush.msra.mxu0 0.0
  %373 = vmatpush.msra.mxu0 %v227
  %374 = vmatpush.msra.mxu0 %v226
  %375 = vmatpush.msra.mxu0 %v225
  %376 = vmatpush.msra.mxu0 %v224
  %377 = vmatmul.f32.gmra.mxu0 %v359
  %v378 = vpop.f32.mrf.mxu0
  %v379 = vadd.f32 0.0, %v378
  %380 = vdwg.mxu0
  %v381 = vadd.f32 %v358, %v379
  %v382 = vmul.f32 %v381, %v237
  %v383 = vtanh.pop %v382
  %v384 = vmul.f32 %v383, %v237
  %v385 = vadd.f32 %v384, %v238
  %v386 = vmul.f32 %v385, %v290
  %388 = vrot.lane.b32.xlu0 %v385, 64
  %v389 = vpop.permute.xlu0 %388
  %v391 = vmul.f32 %v385, %v389
  %393 = vrot.lane.b32.xlu0 %v391, 32
  %v394 = vpop.permute.xlu0 %393
  %v396 = vadd.f32 %v386, %v394
  %v397 = vtanh.pop %v396
  %399 = vrot.lane.b32.xlu0 %v397, 64
  %v400 = vpop.permute.xlu0 %399
  %v402 = vmul.f32 %v385, %v400
  %s403 = scalar_lea.vmem [#allocation4], 8
  %v404 = vld [vmem:[%s403] sm:$0xff]
  %v405 = vsel %vm247, %v354, 0
  %407 = vmatpush.msra.mxu0 0.0
  %408 = vmatpush.msra.mxu0 0.0
  %409 = vmatpush.msra.mxu0 0.0
  %410 = vmatpush.msra.mxu0 0.0
  %411 = vmatpush.msra.mxu0 0.0
  %412 = vmatpush.msra.mxu0 0.0
  %413 = vmatpush.msra.mxu0 0.0
  %414 = vmatpush.msra.mxu0 0.0
  %415 = vmatpush.msra.mxu0 0.0
  %416 = vmatpush.msra.mxu0 0.0
  %417 = vmatpush.msra.mxu0 0.0
  %418 = vmatpush.msra.mxu0 0.0
  %419 = vmatpush.msra.mxu0 %v231
  %420 = vmatpush.msra.mxu0 %v230
  %421 = vmatpush.msra.mxu0 %v229
  %422 = vmatpush.msra.mxu0 %v228
  %423 = vmatmul.f32.gmra.mxu0 %v405
  %v424 = vpop.f32.mrf.mxu0
  %v425 = vadd.f32 0.0, %v424
  %426 = vdwg.mxu0
  %v427 = vadd.f32 %v404, %v425
  %v428 = vmul.f32 %v427, %v237
  %v429 = vtanh.pop %v428
  %v430 = vmul.f32 %v429, %v237
  %v431 = vadd.f32 %v430, %v238
  %v432 = vmul.f32 %v431, %v340
  %434 = vrot.lane.b32.xlu0 %v431, 64
  %v435 = vpop.permute.xlu0 %434
  %v437 = vmul.f32 %v431, %v435
  %439 = vrot.lane.b32.xlu0 %v437, 32
  %v440 = vpop.permute.xlu0 %439
  %v442 = vadd.f32 %v432, %v440
  %v443 = vtanh.pop %v442
  %445 = vrot.lane.b32.xlu0 %v443, 64
  %v446 = vpop.permute.xlu0 %445
  %v448 = vmul.f32 %v431, %v446
  %450 = vrot.lane.b32.xlu0 %v402, 32
  %v451 = vpop.permute.xlu0 %450
  %s453 = scalar_lea.vmem [#allocation5], 8
  %454 = vst.msk [vmem:[%s453] sm:$0xff] %vm247, %v451
  %456 = vrot.lane.b32.xlu0 %v448, 32
  %v457 = vpop.permute.xlu0 %456
  %s459 = scalar_lea.vmem [#allocation6], 8
  %460 = vst.msk [vmem:[%s459] sm:$0xff] %vm247, %v457
  %s461 = scalar_lea.vmem [#allocation3], 16
  %v462 = vld [vmem:[%s461] sm:$0xff]
  %v463 = vsel %vm247, %v451, 0
  %465 = vmatpush.msra.mxu0 0.0
  %466 = vmatpush.msra.mxu0 0.0
  %467 = vmatpush.msra.mxu0 0.0
  %468 = vmatpush.msra.mxu0 0.0
  %469 = vmatpush.msra.mxu0 0.0
  %470 = vmatpush.msra.mxu0 0.0
  %471 = vmatpush.msra.mxu0 0.0
  %472 = vmatpush.msra.mxu0 0.0
  %473 = vmatpush.msra.mxu0 0.0
  %474 = vmatpush.msra.mxu0 0.0
  %475 = vmatpush.msra.mxu0 0.0
  %476 = vmatpush.msra.mxu0 0.0
  %477 = vmatpush.msra.mxu0 %v227
  %478 = vmatpush.msra.mxu0 %v226
  %479 = vmatpush.msra.mxu0 %v225
  %480 = vmatpush.msra.mxu0 %v224
  %481 = vmatmul.f32.gmra.mxu0 %v463
  %v482 = vpop.f32.mrf.mxu0
  %v483 = vadd.f32 0.0, %v482
  %484 = vdwg.mxu0
  %v485 = vadd.f32 %v462, %v483
  %v486 = vmul.f32 %v485, %v237
  %v487 = vtanh.pop %v486
  %v488 = vmul.f32 %v487, %v237
  %v489 = vadd.f32 %v488, %v238
  %v490 = vmul.f32 %v489, %v396
  %492 = vrot.lane.b32.xlu0 %v489, 64
  %v493 = vpop.permute.xlu0 %492
  %v495 = vmul.f32 %v489, %v493
  %497 = vrot.lane.b32.xlu0 %v495, 32
  %v498 = vpop.permute.xlu0 %497
  %v500 = vadd.f32 %v490, %v498
  %v501 = vtanh.pop %v500
  %503 = vrot.lane.b32.xlu0 %v501, 64
  %v504 = vpop.permute.xlu0 %503
  %v506 = vmul.f32 %v489, %v504
  %s507 = scalar_lea.vmem [#allocation4], 16
  %v508 = vld [vmem:[%s507] sm:$0xff]
  %v509 = vsel %vm247, %v457, 0
  %511 = vmatpush.msra.mxu0 0.0
  %512 = vmatpush.msra.mxu0 0.0
  %513 = vmatpush.msra.mxu0 0.0
  %514 = vmatpush.msra.mxu0 0.0
  %515 = vmatpush.msra.mxu0 0.0
  %516 = vmatpush.msra.mxu0 0.0
  %517 = vmatpush.msra.mxu0 0.0
  %518 = vmatpush.msra.mxu0 0.0
  %519 = vmatpush.msra.mxu0 0.0
  %520 = vmatpush.msra.mxu0 0.0
  %521 = vmatpush.msra.mxu0 0.0
  %522 = vmatpush.msra.mxu0 0.0
  %523 = vmatpush.msra.mxu0 %v231
  %524 = vmatpush.msra.mxu0 %v230
  %525 = vmatpush.msra.mxu0 %v229
  %526 = vmatpush.msra.mxu0 %v228
  %527 = vmatmul.f32.gmra.mxu0 %v509
  %v528 = vpop.f32.mrf.mxu0
  %v529 = vadd.f32 0.0, %v528
  %530 = vdwg.mxu0
  %v531 = vadd.f32 %v508, %v529
  %v532 = vmul.f32 %v531, %v237
  %v533 = vtanh.pop %v532
  %v534 = vmul.f32 %v533, %v237
  %v535 = vadd.f32 %v534, %v238
  %v536 = vmul.f32 %v535, %v442
  %538 = vrot.lane.b32.xlu0 %v535, 64
  %v539 = vpop.permute.xlu0 %538
  %v541 = vmul.f32 %v535, %v539
  %543 = vrot.lane.b32.xlu0 %v541, 32
  %v544 = vpop.permute.xlu0 %543
  %v546 = vadd.f32 %v536, %v544
  %v547 = vtanh.pop %v546
  %549 = vrot.lane.b32.xlu0 %v547, 64
  %v550 = vpop.permute.xlu0 %549
  %v552 = vmul.f32 %v535, %v550
  %554 = vrot.lane.b32.xlu0 %v506, 32
  %v555 = vpop.permute.xlu0 %554
  %s557 = scalar_lea.vmem [#allocation5], 16
  %558 = vst.msk [vmem:[%s557] sm:$0xff] %vm247, %v555
  %560 = vrot.lane.b32.xlu0 %v552, 32
  %v561 = vpop.permute.xlu0 %560
  %s563 = scalar_lea.vmem [#allocation6], 16
  %564 = vst.msk [vmem:[%s563] sm:$0xff] %vm247, %v561
  %s565 = scalar_lea.vmem [#allocation3], 24
  %v566 = vld [vmem:[%s565] sm:$0xff]
  %v567 = vsel %vm247, %v555, 0
  %569 = vmatpush.msra.mxu0 0.0
  %570 = vmatpush.msra.mxu0 0.0
  %571 = vmatpush.msra.mxu0 0.0
  %572 = vmatpush.msra.mxu0 0.0
  %573 = vmatpush.msra.mxu0 0.0
  %574 = vmatpush.msra.mxu0 0.0
  %575 = vmatpush.msra.mxu0 0.0
  %576 = vmatpush.msra.mxu0 0.0
  %577 = vmatpush.msra.mxu0 0.0
  %578 = vmatpush.msra.mxu0 0.0
  %579 = vmatpush.msra.mxu0 0.0
  %580 = vmatpush.msra.mxu0 0.0
  %581 = vmatpush.msra.mxu0 %v227
  %582 = vmatpush.msra.mxu0 %v226
  %583 = vmatpush.msra.mxu0 %v225
  %584 = vmatpush.msra.mxu0 %v224
  %585 = vmatmul.f32.gmra.mxu0 %v567
  %v586 = vpop.f32.mrf.mxu0
  %v587 = vadd.f32 0.0, %v586
  %588 = vdwg.mxu0
  %v589 = vadd.f32 %v566, %v587
  %v590 = vmul.f32 %v589, %v237
  %v591 = vtanh.pop %v590
  %v592 = vmul.f32 %v591, %v237
  %v593 = vadd.f32 %v592, %v238
  %v594 = vmul.f32 %v593, %v500
  %596 = vrot.lane.b32.xlu0 %v593, 64
  %v597 = vpop.permute.xlu0 %596
  %v599 = vmul.f32 %v593, %v597
  %601 = vrot.lane.b32.xlu0 %v599, 32
  %v602 = vpop.permute.xlu0 %601
  %v604 = vadd.f32 %v594, %v602
  %v605 = vtanh.pop %v604
  %607 = vrot.lane.b32.xlu0 %v605, 64
  %v608 = vpop.permute.xlu0 %607
  %v610 = vmul.f32 %v593, %v608
  %s611 = scalar_lea.vmem [#allocation4], 24
  %v612 = vld [vmem:[%s611] sm:$0xff]
  %v613 = vsel %vm247, %v561, 0
  %615 = vmatpush.msra.mxu0 0.0
  %616 = vmatpush.msra.mxu0 0.0
  %617 = vmatpush.msra.mxu0 0.0
  %618 = vmatpush.msra.mxu0 0.0
  %619 = vmatpush.msra.mxu0 0.0
  %620 = vmatpush.msra.mxu0 0.0
  %621 = vmatpush.msra.mxu0 0.0
  %622 = vmatpush.msra.mxu0 0.0
  %623 = vmatpush.msra.mxu0 0.0
  %624 = vmatpush.msra.mxu0 0.0
  %625 = vmatpush.msra.mxu0 0.0
  %626 = vmatpush.msra.mxu0 0.0
  %627 = vmatpush.msra.mxu0 %v231
  %628 = vmatpush.msra.mxu0 %v230
  %629 = vmatpush.msra.mxu0 %v229
  %630 = vmatpush.msra.mxu0 %v228
  %631 = vmatmul.f32.gmra.mxu0 %v613
  %v632 = vpop.f32.mrf.mxu0
  %v633 = vadd.f32 0.0, %v632
  %634 = vdwg.mxu0
  %v635 = vadd.f32 %v612, %v633
  %v636 = vmul.f32 %v635, %v237
  %v637 = vtanh.pop %v636
  %v638 = vmul.f32 %v637, %v237
  %v639 = vadd.f32 %v638, %v238
  %v640 = vmul.f32 %v639, %v546
  %642 = vrot.lane.b32.xlu0 %v639, 64
  %v643 = vpop.permute.xlu0 %642
  %v645 = vmul.f32 %v639, %v643
  %647 = vrot.lane.b32.xlu0 %v645, 32
  %v648 = vpop.permute.xlu0 %647
  %v650 = vadd.f32 %v640, %v648
  %v651 = vtanh.pop %v650
  %653 = vrot.lane.b32.xlu0 %v651, 64
  %v654 = vpop.permute.xlu0 %653
  %v656 = vmul.f32 %v639, %v654
  %658 = vrot.lane.b32.xlu0 %v610, 32
  %v659 = vpop.permute.xlu0 %658
  %s661 = scalar_lea.vmem [#allocation5], 24
  %662 = vst.msk [vmem:[%s661] sm:$0xff] %vm247, %v659
  %664 = vrot.lane.b32.xlu0 %v656, 32
  %v665 = vpop.permute.xlu0 %664
  %s667 = scalar_lea.vmem [#allocation6], 24
  %668 = vst.msk [vmem:[%s667] sm:$0xff] %vm247, %v665
  %s669 = scalar_lea.vmem [#allocation3], 32
  %v670 = vld [vmem:[%s669] sm:$0xff]
  %v671 = vsel %vm247, %v659, 0
  %673 = vmatpush.msra.mxu0 0.0
  %674 = vmatpush.msra.mxu0 0.0
  %675 = vmatpush.msra.mxu0 0.0
  %676 = vmatpush.msra.mxu0 0.0
  %677 = vmatpush.msra.mxu0 0.0
  %678 = vmatpush.msra.mxu0 0.0
  %679 = vmatpush.msra.mxu0 0.0
  %680 = vmatpush.msra.mxu0 0.0
  %681 = vmatpush.msra.mxu0 0.0
  %682 = vmatpush.msra.mxu0 0.0
  %683 = vmatpush.msra.mxu0 0.0
  %684 = vmatpush.msra.mxu0 0.0
  %685 = vmatpush.msra.mxu0 %v227
  %686 = vmatpush.msra.mxu0 %v226
  %687 = vmatpush.msra.mxu0 %v225
  %688 = vmatpush.msra.mxu0 %v224
  %689 = vmatmul.f32.gmra.mxu0 %v671
  %v690 = vpop.f32.mrf.mxu0
  %v691 = vadd.f32 0.0, %v690
  %692 = vdwg.mxu0
  %v693 = vadd.f32 %v670, %v691
  %v694 = vmul.f32 %v693, %v237
  %v695 = vtanh.pop %v694
  %v696 = vmul.f32 %v695, %v237
  %v697 = vadd.f32 %v696, %v238
  %v698 = vmul.f32 %v697, %v604
  %700 = vrot.lane.b32.xlu0 %v697, 64
  %v701 = vpop.permute.xlu0 %700
  %v703 = vmul.f32 %v697, %v701
  %705 = vrot.lane.b32.xlu0 %v703, 32
  %v706 = vpop.permute.xlu0 %705
  %v708 = vadd.f32 %v698, %v706
  %v709 = vtanh.pop %v708
  %711 = vrot.lane.b32.xlu0 %v709, 64
  %v712 = vpop.permute.xlu0 %711
  %v714 = vmul.f32 %v697, %v712
  %s715 = scalar_lea.vmem [#allocation4], 32
  %v716 = vld [vmem:[%s715] sm:$0xff]
  %v717 = vsel %vm247, %v665, 0
  %719 = vmatpush.msra.mxu0 0.0
  %720 = vmatpush.msra.mxu0 0.0
  %721 = vmatpush.msra.mxu0 0.0
  %722 = vmatpush.msra.mxu0 0.0
  %723 = vmatpush.msra.mxu0 0.0
  %724 = vmatpush.msra.mxu0 0.0
  %725 = vmatpush.msra.mxu0 0.0
  %726 = vmatpush.msra.mxu0 0.0
  %727 = vmatpush.msra.mxu0 0.0
  %728 = vmatpush.msra.mxu0 0.0
  %729 = vmatpush.msra.mxu0 0.0
  %730 = vmatpush.msra.mxu0 0.0
  %731 = vmatpush.msra.mxu0 %v231
  %732 = vmatpush.msra.mxu0 %v230
  %733 = vmatpush.msra.mxu0 %v229
  %734 = vmatpush.msra.mxu0 %v228
  %735 = vmatmul.f32.gmra.mxu0 %v717
  %v736 = vpop.f32.mrf.mxu0
  %v737 = vadd.f32 0.0, %v736
  %738 = vdwg.mxu0
  %v739 = vadd.f32 %v716, %v737
  %v740 = vmul.f32 %v739, %v237
  %v741 = vtanh.pop %v740
  %v742 = vmul.f32 %v741, %v237
  %v743 = vadd.f32 %v742, %v238
  %v744 = vmul.f32 %v743, %v650
  %746 = vrot.lane.b32.xlu0 %v743, 64
  %v747 = vpop.permute.xlu0 %746
  %v749 = vmul.f32 %v743, %v747
  %751 = vrot.lane.b32.xlu0 %v749, 32
  %v752 = vpop.permute.xlu0 %751
  %v754 = vadd.f32 %v744, %v752
  %v755 = vtanh.pop %v754
  %757 = vrot.lane.b32.xlu0 %v755, 64
  %v758 = vpop.permute.xlu0 %757
  %v760 = vmul.f32 %v743, %v758
  %762 = vrot.lane.b32.xlu0 %v714, 32
  %v763 = vpop.permute.xlu0 %762
  %s765 = scalar_lea.vmem [#allocation5], 32
  %766 = vst.msk [vmem:[%s765] sm:$0xff] %vm247, %v763
  %768 = vrot.lane.b32.xlu0 %v760, 32
  %v769 = vpop.permute.xlu0 %768
  %s771 = scalar_lea.vmem [#allocation6], 32
  %772 = vst.msk [vmem:[%s771] sm:$0xff] %vm247, %v769
  %s773 = scalar_lea.vmem [#allocation3], 40
  %v774 = vld [vmem:[%s773] sm:$0xff]
  %v775 = vsel %vm247, %v763, 0
  %777 = vmatpush.msra.mxu0 0.0
  %778 = vmatpush.msra.mxu0 0.0
  %779 = vmatpush.msra.mxu0 0.0
  %780 = vmatpush.msra.mxu0 0.0
  %781 = vmatpush.msra.mxu0 0.0
  %782 = vmatpush.msra.mxu0 0.0
  %783 = vmatpush.msra.mxu0 0.0
  %784 = vmatpush.msra.mxu0 0.0
  %785 = vmatpush.msra.mxu0 0.0
  %786 = vmatpush.msra.mxu0 0.0
  %787 = vmatpush.msra.mxu0 0.0
  %788 = vmatpush.msra.mxu0 0.0
  %789 = vmatpush.msra.mxu0 %v227
  %790 = vmatpush.msra.mxu0 %v226
  %791 = vmatpush.msra.mxu0 %v225
  %792 = vmatpush.msra.mxu0 %v224
  %793 = vmatmul.f32.gmra.mxu0 %v775
  %v794 = vpop.f32.mrf.mxu0
  %v795 = vadd.f32 0.0, %v794
  %796 = vdwg.mxu0
  %v797 = vadd.f32 %v774, %v795
  %v798 = vmul.f32 %v797, %v237
  %v799 = vtanh.pop %v798
  %v800 = vmul.f32 %v799, %v237
  %v801 = vadd.f32 %v800, %v238
  %v802 = vmul.f32 %v801, %v708
  %804 = vrot.lane.b32.xlu0 %v801, 64
  %v805 = vpop.permute.xlu0 %804
  %v807 = vmul.f32 %v801, %v805
  %809 = vrot.lane.b32.xlu0 %v807, 32
  %v810 = vpop.permute.xlu0 %809
  %v812 = vadd.f32 %v802, %v810
  %v813 = vtanh.pop %v812
  %815 = vrot.lane.b32.xlu0 %v813, 64
  %v816 = vpop.permute.xlu0 %815
  %v818 = vmul.f32 %v801, %v816
  %s819 = scalar_lea.vmem [#allocation4], 40
  %v820 = vld [vmem:[%s819] sm:$0xff]
  %v821 = vsel %vm247, %v769, 0
  %823 = vmatpush.msra.mxu0 0.0
  %824 = vmatpush.msra.mxu0 0.0
  %825 = vmatpush.msra.mxu0 0.0
  %826 = vmatpush.msra.mxu0 0.0
  %827 = vmatpush.msra.mxu0 0.0
  %828 = vmatpush.msra.mxu0 0.0
  %829 = vmatpush.msra.mxu0 0.0
  %830 = vmatpush.msra.mxu0 0.0
  %831 = vmatpush.msra.mxu0 0.0
  %832 = vmatpush.msra.mxu0 0.0
  %833 = vmatpush.msra.mxu0 0.0
  %834 = vmatpush.msra.mxu0 0.0
  %835 = vmatpush.msra.mxu0 %v231
  %836 = vmatpush.msra.mxu0 %v230
  %837 = vmatpush.msra.mxu0 %v229
  %838 = vmatpush.msra.mxu0 %v228
  %839 = vmatmul.f32.gmra.mxu0 %v821
  %v840 = vpop.f32.mrf.mxu0
  %v841 = vadd.f32 0.0, %v840
  %842 = vdwg.mxu0
  %v843 = vadd.f32 %v820, %v841
  %v844 = vmul.f32 %v843, %v237
  %v845 = vtanh.pop %v844
  %v846 = vmul.f32 %v845, %v237
  %v847 = vadd.f32 %v846, %v238
  %v848 = vmul.f32 %v847, %v754
  %850 = vrot.lane.b32.xlu0 %v847, 64
  %v851 = vpop.permute.xlu0 %850
  %v853 = vmul.f32 %v847, %v851
  %855 = vrot.lane.b32.xlu0 %v853, 32
  %v856 = vpop.permute.xlu0 %855
  %v858 = vadd.f32 %v848, %v856
  %v859 = vtanh.pop %v858
  %861 = vrot.lane.b32.xlu0 %v859, 64
  %v862 = vpop.permute.xlu0 %861
  %v864 = vmul.f32 %v847, %v862
  %866 = vrot.lane.b32.xlu0 %v818, 32
  %v867 = vpop.permute.xlu0 %866
  %s869 = scalar_lea.vmem [#allocation5], 40
  %870 = vst.msk [vmem:[%s869] sm:$0xff] %vm247, %v867
  %872 = vrot.lane.b32.xlu0 %v864, 32
  %v873 = vpop.permute.xlu0 %872
  %s875 = scalar_lea.vmem [#allocation6], 40
  %876 = vst.msk [vmem:[%s875] sm:$0xff] %vm247, %v873
  %s877 = scalar_lea.vmem [#allocation3], 48
  %v878 = vld [vmem:[%s877] sm:$0xff]
  %v879 = vsel %vm247, %v867, 0
  %881 = vmatpush.msra.mxu0 0.0
  %882 = vmatpush.msra.mxu0 0.0
  %883 = vmatpush.msra.mxu0 0.0
  %884 = vmatpush.msra.mxu0 0.0
  %885 = vmatpush.msra.mxu0 0.0
  %886 = vmatpush.msra.mxu0 0.0
  %887 = vmatpush.msra.mxu0 0.0
  %888 = vmatpush.msra.mxu0 0.0
  %889 = vmatpush.msra.mxu0 0.0
  %890 = vmatpush.msra.mxu0 0.0
  %891 = vmatpush.msra.mxu0 0.0
  %892 = vmatpush.msra.mxu0 0.0
  %893 = vmatpush.msra.mxu0 %v227
  %894 = vmatpush.msra.mxu0 %v226
  %895 = vmatpush.msra.mxu0 %v225
  %896 = vmatpush.msra.mxu0 %v224
  %897 = vmatmul.f32.gmra.mxu0 %v879
  %v898 = vpop.f32.mrf.mxu0
  %v899 = vadd.f32 0.0, %v898
  %900 = vdwg.mxu0
  %v901 = vadd.f32 %v878, %v899
  %v902 = vmul.f32 %v901, %v237
  %v903 = vtanh.pop %v902
  %v904 = vmul.f32 %v903, %v237
  %v905 = vadd.f32 %v904, %v238
  %v906 = vmul.f32 %v905, %v812
  %908 = vrot.lane.b32.xlu0 %v905, 64
  %v909 = vpop.permute.xlu0 %908
  %v911 = vmul.f32 %v905, %v909
  %913 = vrot.lane.b32.xlu0 %v911, 32
  %v914 = vpop.permute.xlu0 %913
  %v916 = vadd.f32 %v906, %v914
  %v917 = vtanh.pop %v916
  %919 = vrot.lane.b32.xlu0 %v917, 64
  %v920 = vpop.permute.xlu0 %919
  %v922 = vmul.f32 %v905, %v920
  %s923 = scalar_lea.vmem [#allocation4], 48
  %v924 = vld [vmem:[%s923] sm:$0xff]
  %v925 = vsel %vm247, %v873, 0
  %927 = vmatpush.msra.mxu0 0.0
  %928 = vmatpush.msra.mxu0 0.0
  %929 = vmatpush.msra.mxu0 0.0
  %930 = vmatpush.msra.mxu0 0.0
  %931 = vmatpush.msra.mxu0 0.0
  %932 = vmatpush.msra.mxu0 0.0
  %933 = vmatpush.msra.mxu0 0.0
  %934 = vmatpush.msra.mxu0 0.0
  %935 = vmatpush.msra.mxu0 0.0
  %936 = vmatpush.msra.mxu0 0.0
  %937 = vmatpush.msra.mxu0 0.0
  %938 = vmatpush.msra.mxu0 0.0
  %939 = vmatpush.msra.mxu0 %v231
  %940 = vmatpush.msra.mxu0 %v230
  %941 = vmatpush.msra.mxu0 %v229
  %942 = vmatpush.msra.mxu0 %v228
  %943 = vmatmul.f32.gmra.mxu0 %v925
  %v944 = vpop.f32.mrf.mxu0
  %v945 = vadd.f32 0.0, %v944
  %946 = vdwg.mxu0
  %v947 = vadd.f32 %v924, %v945
  %v948 = vmul.f32 %v947, %v237
  %v949 = vtanh.pop %v948
  %v950 = vmul.f32 %v949, %v237
  %v951 = vadd.f32 %v950, %v238
  %v952 = vmul.f32 %v951, %v858
  %954 = vrot.lane.b32.xlu0 %v951, 64
  %v955 = vpop.permute.xlu0 %954
  %v957 = vmul.f32 %v951, %v955
  %959 = vrot.lane.b32.xlu0 %v957, 32
  %v960 = vpop.permute.xlu0 %959
  %v962 = vadd.f32 %v952, %v960
  %v963 = vtanh.pop %v962
  %965 = vrot.lane.b32.xlu0 %v963, 64
  %v966 = vpop.permute.xlu0 %965
  %v968 = vmul.f32 %v951, %v966
  %970 = vrot.lane.b32.xlu0 %v922, 32
  %v971 = vpop.permute.xlu0 %970
  %s973 = scalar_lea.vmem [#allocation5], 48
  %974 = vst.msk [vmem:[%s973] sm:$0xff] %vm247, %v971
  %976 = vrot.lane.b32.xlu0 %v968, 32
  %v977 = vpop.permute.xlu0 %976
  %s979 = scalar_lea.vmem [#allocation6], 48
  %980 = vst.msk [vmem:[%s979] sm:$0xff] %vm247, %v977
  %s981 = scalar_lea.vmem [#allocation3], 56
  %v982 = vld [vmem:[%s981] sm:$0xff]
  %v983 = vsel %vm247, %v971, 0
  %985 = vmatpush.msra.mxu0 0.0
  %986 = vmatpush.msra.mxu0 0.0
  %987 = vmatpush.msra.mxu0 0.0
  %988 = vmatpush.msra.mxu0 0.0
  %989 = vmatpush.msra.mxu0 0.0
  %990 = vmatpush.msra.mxu0 0.0
  %991 = vmatpush.msra.mxu0 0.0
  %992 = vmatpush.msra.mxu0 0.0
  %993 = vmatpush.msra.mxu0 0.0
  %994 = vmatpush.msra.mxu0 0.0
  %995 = vmatpush.msra.mxu0 0.0
  %996 = vmatpush.msra.mxu0 0.0
  %997 = vmatpush.msra.mxu0 %v227
  %998 = vmatpush.msra.mxu0 %v226
  %999 = vmatpush.msra.mxu0 %v225
  %1000 = vmatpush.msra.mxu0 %v224
  %1001 = vmatmul.f32.gmra.mxu0 %v983
  %v1002 = vpop.f32.mrf.mxu0
  %v1003 = vadd.f32 0.0, %v1002
  %1004 = vdwg.mxu0
  %v1005 = vadd.f32 %v982, %v1003
  %v1006 = vmul.f32 %v1005, %v237
  %v1007 = vtanh.pop %v1006
  %v1008 = vmul.f32 %v1007, %v237
  %v1009 = vadd.f32 %v1008, %v238
  %v1010 = vmul.f32 %v1009, %v916
  %1012 = vrot.lane.b32.xlu0 %v1009, 64
  %v1013 = vpop.permute.xlu0 %1012
  %v1015 = vmul.f32 %v1009, %v1013
  %1017 = vrot.lane.b32.xlu0 %v1015, 32
  %v1018 = vpop.permute.xlu0 %1017
  %v1020 = vadd.f32 %v1010, %v1018
  %v1021 = vtanh.pop %v1020
  %1023 = vrot.lane.b32.xlu0 %v1021, 64
  %v1024 = vpop.permute.xlu0 %1023
  %v1026 = vmul.f32 %v1009, %v1024
  %s1027 = scalar_lea.vmem [#allocation4], 56
  %v1028 = vld [vmem:[%s1027] sm:$0xff]
  %v1029 = vsel %vm247, %v977, 0
  %1031 = vmatpush.msra.mxu0 0.0
  %1032 = vmatpush.msra.mxu0 0.0
  %1033 = vmatpush.msra.mxu0 0.0
  %1034 = vmatpush.msra.mxu0 0.0
  %1035 = vmatpush.msra.mxu0 0.0
  %1036 = vmatpush.msra.mxu0 0.0
  %1037 = vmatpush.msra.mxu0 0.0
  %1038 = vmatpush.msra.mxu0 0.0
  %1039 = vmatpush.msra.mxu0 0.0
  %1040 = vmatpush.msra.mxu0 0.0
  %1041 = vmatpush.msra.mxu0 0.0
  %1042 = vmatpush.msra.mxu0 0.0
  %1043 = vmatpush.msra.mxu0 %v231
  %1044 = vmatpush.msra.mxu0 %v230
  %1045 = vmatpush.msra.mxu0 %v229
  %1046 = vmatpush.msra.mxu0 %v228
  %1047 = vmatmul.f32.gmra.mxu0 %v1029
  %v1048 = vpop.f32.mrf.mxu0
  %v1049 = vadd.f32 0.0, %v1048
  %1050 = vdwg.mxu0
  %v1051 = vadd.f32 %v1028, %v1049
  %v1052 = vmul.f32 %v1051, %v237
  %v1053 = vtanh.pop %v1052
  %v1054 = vmul.f32 %v1053, %v237
  %v1055 = vadd.f32 %v1054, %v238
  %v1056 = vmul.f32 %v1055, %v962
  %1058 = vrot.lane.b32.xlu0 %v1055, 64
  %v1059 = vpop.permute.xlu0 %1058
  %v1061 = vmul.f32 %v1055, %v1059
  %1063 = vrot.lane.b32.xlu0 %v1061, 32
  %v1064 = vpop.permute.xlu0 %1063
  %v1066 = vadd.f32 %v1056, %v1064
  %v1067 = vtanh.pop %v1066
  %1069 = vrot.lane.b32.xlu0 %v1067, 64
  %v1070 = vpop.permute.xlu0 %1069
  %v1072 = vmul.f32 %v1055, %v1070
  %1074 = vrot.lane.b32.xlu0 %v1026, 32
  %v1075 = vpop.permute.xlu0 %1074
  %s1077 = scalar_lea.vmem [#allocation5], 56
  %1078 = vst.msk [vmem:[%s1077] sm:$0xff] %vm247, %v1075
  %1080 = vrot.lane.b32.xlu0 %v1072, 32
  %v1081 = vpop.permute.xlu0 %1080
  %s1083 = scalar_lea.vmem [#allocation6], 56
  %1084 = vst.msk [vmem:[%s1083] sm:$0xff] %vm247, %v1081
  %1085 = vst.msk [vmem:[#allocation2] sm:$0xff] %vm247, %v1075
  %1087 = vrot.lane.b32.xlu0 %v1020, 96
  %v1088 = vpop.permute.xlu0 %1087
  %1090 = vst.msk [vmem:[%s240] sm:$0xff] %vm247, %v1088
  %1091 = vst.msk [vmem:[%s242] sm:$0xff] %vm247, %v1081
  %1093 = vrot.lane.b32.xlu0 %v1066, 96
  %v1094 = vpop.permute.xlu0 %1093
  %1096 = vst.msk [vmem:[%s244] sm:$0xff] %vm247, %v1094
  %v1097 = vld [vmem:[#allocation5] sm:$0xff]
  %v1098 = vld [vmem:[#allocation5 + $0x8] sm:$0xff]
  %v1099 = vld [vmem:[#allocation5 + $0x10] sm:$0xff]
  %v1100 = vld [vmem:[#allocation5 + $0x18] sm:$0xff]
  %v1101 = vld [vmem:[#allocation5 + $0x20] sm:$0xff]
  %v1102 = vld [vmem:[#allocation5 + $0x28] sm:$0xff]
  %v1103 = vld [vmem:[#allocation5 + $0x30] sm:$0xff]
  %v1104 = vld [vmem:[#allocation5 + $0x38] sm:$0xff]
  %v1105 = vld [vmem:[#allocation6] sm:$0xff]
  %v1106 = vld [vmem:[#allocation6 + $0x8] sm:$0xff]
  %v1107 = vld [vmem:[#allocation6 + $0x10] sm:$0xff]
  %v1108 = vld [vmem:[#allocation6 + $0x18] sm:$0xff]
  %v1109 = vld [vmem:[#allocation6 + $0x20] sm:$0xff]
  %v1110 = vld [vmem:[#allocation6 + $0x28] sm:$0xff]
  %v1111 = vld [vmem:[#allocation6 + $0x30] sm:$0xff]
  %v1112 = vld [vmem:[#allocation6 + $0x38] sm:$0xff]
  %v1113 = vld [vmem:[%s8] sm:$0xff]
  %v1114 = vld [vmem:[%s8 + $0x8] sm:$0xff]
  %v1115 = vld [vmem:[%s8 + $0x10] sm:$0xff]
  %v1116 = vld [vmem:[%s8 + $0x18] sm:$0xff]
  %v1117 = vld [vmem:[%s10] sm:$0x1]
  %v1119 = vperm.slane %v1117, 0
  %v1122 = vsel %vm247, %v1097, 0
  %v1125 = vsel %vm247, %v1098, 0
  %v1128 = vsel %vm247, %v1099, 0
  %v1131 = vsel %vm247, %v1100, 0
  %v1134 = vsel %vm247, %v1101, 0
  %v1137 = vsel %vm247, %v1102, 0
  %v1140 = vsel %vm247, %v1103, 0
  %v1143 = vsel %vm247, %v1104, 0
  %1145 = vmatpush.msra.mxu0 0.0
  %1146 = vmatpush.msra.mxu0 0.0
  %1147 = vmatpush.msra.mxu0 0.0
  %1148 = vmatpush.msra.mxu0 0.0
  %1149 = vmatpush.msra.mxu0 0.0
  %1150 = vmatpush.msra.mxu0 0.0
  %1151 = vmatpush.msra.mxu0 0.0
  %1152 = vmatpush.msra.mxu0 0.0
  %1153 = vmatpush.msra.mxu0 0.0
  %1154 = vmatpush.msra.mxu0 0.0
  %1155 = vmatpush.msra.mxu0 0.0
  %1156 = vmatpush.msra.mxu0 0.0
  %1157 = vmatpush.msra.mxu0 %v1116
  %1158 = vmatpush.msra.mxu0 %v1115
  %1159 = vmatpush.msra.mxu0 %v1114
  %1160 = vmatpush.msra.mxu0 %v1113
  %1161 = vmatmul.f32.gmra.mxu0 %v1122
  %v1162 = vpop.f32.mrf.mxu0
  %v1163 = vadd.f32 %v1119, %v1162
  %1164 = vmatmul.f32.gmra.mxu0 %v1125
  %v1165 = vpop.f32.mrf.mxu0
  %v1166 = vadd.f32 %v1119, %v1165
  %1167 = vmatmul.f32.gmra.mxu0 %v1128
  %v1168 = vpop.f32.mrf.mxu0
  %v1169 = vadd.f32 %v1119, %v1168
  %1170 = vmatmul.f32.gmra.mxu0 %v1131
  %v1171 = vpop.f32.mrf.mxu0
  %v1172 = vadd.f32 %v1119, %v1171
  %1173 = vmatmul.f32.gmra.mxu0 %v1134
  %v1174 = vpop.f32.mrf.mxu0
  %v1175 = vadd.f32 %v1119, %v1174
  %1176 = vmatmul.f32.gmra.mxu0 %v1137
  %v1177 = vpop.f32.mrf.mxu0
  %v1178 = vadd.f32 %v1119, %v1177
  %1179 = vmatmul.f32.gmra.mxu0 %v1140
  %v1180 = vpop.f32.mrf.mxu0
  %v1181 = vadd.f32 %v1119, %v1180
  %1182 = vmatmul.f32.gmra.mxu0 %v1143
  %v1183 = vpop.f32.mrf.mxu0
  %v1184 = vadd.f32 %v1119, %v1183
  %1185 = vdwg.mxu0
  %1186 = vst [vmem:[%s11] sm:$0xff] %v1163
  %1187 = vst [vmem:[%s11 + $0x8] sm:$0xff] %v1166
  %1188 = vst [vmem:[%s11 + $0x10] sm:$0xff] %v1169
  %1189 = vst [vmem:[%s11 + $0x18] sm:$0xff] %v1172
  %1190 = vst [vmem:[%s11 + $0x20] sm:$0xff] %v1175
  %1191 = vst [vmem:[%s11 + $0x28] sm:$0xff] %v1178
  %1192 = vst [vmem:[%s11 + $0x30] sm:$0xff] %v1181
  %1193 = vst [vmem:[%s11 + $0x38] sm:$0xff] %v1184
  %v1194 = vld [vmem:[%s9] sm:$0xff]
  %v1195 = vld [vmem:[%s9 + $0x8] sm:$0xff]
  %v1196 = vld [vmem:[%s9 + $0x10] sm:$0xff]
  %v1197 = vld [vmem:[%s9 + $0x18] sm:$0xff]
  %v1199 = vsel %vm247, %v1105, 0
  %v1202 = vsel %vm247, %v1106, 0
  %v1205 = vsel %vm247, %v1107, 0
  %v1208 = vsel %vm247, %v1108, 0
  %v1211 = vsel %vm247, %v1109, 0
  %v1214 = vsel %vm247, %v1110, 0
  %v1217 = vsel %vm247, %v1111, 0
  %v1220 = vsel %vm247, %v1112, 0
  %1222 = vmatpush.msra.mxu0 0.0
  %1223 = vmatpush.msra.mxu0 0.0
  %1224 = vmatpush.msra.mxu0 0.0
  %1225 = vmatpush.msra.mxu0 0.0
  %1226 = vmatpush.msra.mxu0 0.0
  %1227 = vmatpush.msra.mxu0 0.0
  %1228 = vmatpush.msra.mxu0 0.0
  %1229 = vmatpush.msra.mxu0 0.0
  %1230 = vmatpush.msra.mxu0 0.0
  %1231 = vmatpush.msra.mxu0 0.0
  %1232 = vmatpush.msra.mxu0 0.0
  %1233 = vmatpush.msra.mxu0 0.0
  %1234 = vmatpush.msra.mxu0 %v1197
  %1235 = vmatpush.msra.mxu0 %v1196
  %1236 = vmatpush.msra.mxu0 %v1195
  %1237 = vmatpush.msra.mxu0 %v1194
  %1238 = vmatmul.f32.gmra.mxu0 %v1199
  %v1239 = vpop.f32.mrf.mxu0
  %v1240 = vadd.f32 0.0, %v1239
  %1241 = vmatmul.f32.gmra.mxu0 %v1202
  %v1242 = vpop.f32.mrf.mxu0
  %v1243 = vadd.f32 0.0, %v1242
  %1244 = vmatmul.f32.gmra.mxu0 %v1205
  %v1245 = vpop.f32.mrf.mxu0
  %v1246 = vadd.f32 0.0, %v1245
  %1247 = vmatmul.f32.gmra.mxu0 %v1208
  %v1248 = vpop.f32.mrf.mxu0
  %v1249 = vadd.f32 0.0, %v1248
  %1250 = vmatmul.f32.gmra.mxu0 %v1211
  %v1251 = vpop.f32.mrf.mxu0
  %v1252 = vadd.f32 0.0, %v1251
  %1253 = vmatmul.f32.gmra.mxu0 %v1214
  %v1254 = vpop.f32.mrf.mxu0
  %v1255 = vadd.f32 0.0, %v1254
  %1256 = vmatmul.f32.gmra.mxu0 %v1217
  %v1257 = vpop.f32.mrf.mxu0
  %v1258 = vadd.f32 0.0, %v1257
  %1259 = vmatmul.f32.gmra.mxu0 %v1220
  %v1260 = vpop.f32.mrf.mxu0
  %v1261 = vadd.f32 0.0, %v1260
  %1262 = vdwg.mxu0
  %1263 = vst [vmem:[%s12] sm:$0xff] %v1240
  %1264 = vst [vmem:[%s12 + $0x8] sm:$0xff] %v1243
  %1265 = vst [vmem:[%s12 + $0x10] sm:$0xff] %v1246
  %1266 = vst [vmem:[%s12 + $0x18] sm:$0xff] %v1249
  %1267 = vst [vmem:[%s12 + $0x20] sm:$0xff] %v1252
  %1268 = vst [vmem:[%s12 + $0x28] sm:$0xff] %v1255
  %1269 = vst [vmem:[%s12 + $0x30] sm:$0xff] %v1258
  %1270 = vst [vmem:[%s12 + $0x38] sm:$0xff] %v1261
  // Predicated region
  $region50: #{bidirectional_lstm_forward.1} parent=0 // pred_check
    _
  $region51: #{bidirectional_lstm_forward.1} parent=0 // pred_check_branch
    %1272 = sbr.rel (0) target = $region53
  $region52: #{bidirectional_lstm_forward.1} parent=0 // pred_region
    _
  $region53: #{bidirectional_lstm_forward.1} parent=0 // pred_fallthru
    _
  // Predicated region
  $region54: #{bidirectional_lstm_forward.1} parent=0 // pred_check
    _
  $region55: #{bidirectional_lstm_forward.1} parent=0 // pred_check_branch
    %1274 = sbr.rel (0) target = $region57
  $region56: #{bidirectional_lstm_forward.1} parent=0 // pred_region
    _
  $region57: #{bidirectional_lstm_forward.1} parent=0 // pred_fallthru
    _
  // Predicated region
  $region58: #{bidirectional_lstm_forward.1} parent=0 // pred_check
    _
  $region59: #{bidirectional_lstm_forward.1} parent=0 // pred_check_branch
    %1276 = sbr.rel (0) target = $region61
  $region60: #{bidirectional_lstm_forward.1} parent=0 // pred_region
    _
  $region61: #{bidirectional_lstm_forward.1} parent=0 // pred_fallthru
    _
  // Predicated region
  $region62: #{bidirectional_lstm_forward.1} parent=0 // pred_check
    _
  $region63: #{bidirectional_lstm_forward.1} parent=0 // pred_check_branch
    %1278 = sbr.rel (0) target = $region65
  $region64: #{bidirectional_lstm_forward.1} parent=0 // pred_region
    _
  $region65: #{bidirectional_lstm_forward.1} parent=0 // pred_fallthru
    _

</llo_original>
